<compile_context>
chip_gen: v7x
topology: tpu7x:2x2x1
jax: 0.10.0
libtpu: 0.0.40
codegen_flags: <defaults>
</compile_context>

<pallas_src>
import functools

import jax
import jax.numpy as jnp
from jax import lax
from jax.experimental import pallas as pl
from jax.experimental.pallas import tpu as pltpu

EPS = 1e-5
_LANE = 128
_SUB = 8


def _round_up(x, m):
    return (x + m - 1) // m * m


def _pad_dim(d):
    # v6e/v7x MXUs are 2x256^2: use 256-wide K / Cout once the real dims justify it.
    return _round_up(d, 256) if d >= 256 else _round_up(d, _LANE)


def _vmem_limit_bytes():
    # Generation-aware scoped-VMEM limit: 64 MiB on 128 MiB parts (v5e/v6e), ~45 MiB on
    # v7x's 64 MiB.  Conservative 32 MiB fallback if the query is unavailable.
    default = 32 * 1024 * 1024
    try:
        phys = getattr(pltpu.get_tpu_info(), "vmem_capacity_bytes", None)
    except Exception:
        return default
    if not phys:
        return default
    return int(min(64 * 1024 * 1024, phys * 0.7))


def _pick_tm(m, k_pad, c_pad, vmem_limit):
    """Pick the M tile (rows) so the double-buffered working set fits the VMEM budget."""
    budget = int(vmem_limit * 0.75)
    # resident weight block (x2 buffers) + tiny stat / scale blocks
    fixed = 2 * (k_pad * c_pad * 2) + 4 * (_SUB * c_pad * 4) + 4 * (c_pad * 4)
    # per-row: bf16 patches + f32 output, both double-buffered
    per_row = 2 * (k_pad * 2) + 2 * (c_pad * 4)
    tm = max((budget - fixed) // per_row, _SUB)
    tm = min(tm, 1024)
    if tm >= 256:
        tm = (tm // 256) * 256          # multiple of 256 (also ok on v5e's 128-wide MXU)
    else:
        tm = max((tm // _SUB) * _SUB, _SUB)
    m8 = _round_up(m, _SUB)
    if m8 <= tm:                        # tiny problems: one tile, no over-padding
        tm = m8
    return tm


# ---------------------------------------------------------------------------
# Pass 1: conv matmul, per-tile partial per-channel sum / sum-of-squares only.
# ---------------------------------------------------------------------------
def _conv_stats_kernel(p_ref, w_ref, sum_ref, sq_ref):
    # [TM, Kp] bf16 x [Kp, Cp] bf16 -> [TM, Cp] f32 on the MXU.  y is NOT written to HBM:
    # only the per-tile partial stats leave the kernel (row 0 of an (8, Cp) block; rows
    # 1..7 are zero so the wrapper's reduction over all rows stays exact).
    y = jnp.dot(p_ref[...], w_ref[...], preferred_element_type=jnp.float32)
    c = y.shape[1]
    s = jnp.sum(y, axis=0, keepdims=True)
    q = jnp.sum(y * y, axis=0, keepdims=True)
    row0 = lax.broadcasted_iota(jnp.int32, (_SUB, c), 0) == 0
    sum_ref[...] = jnp.where(row0, jnp.broadcast_to(s, (_SUB, c)), 0.0)
    sq_ref[...] = jnp.where(row0, jnp.broadcast_to(q, (_SUB, c)), 0.0)


# ---------------------------------------------------------------------------
# Pass 2: recompute the matmul and fuse folded BN scale/shift + ReLU into the store.
# ---------------------------------------------------------------------------
def _conv_bn_relu_kernel(p_ref, w_ref, scale_ref, shift_ref, o_ref):
    y = jnp.dot(p_ref[...], w_ref[...], preferred_element_type=jnp.float32)
    o_ref[...] = jnp.maximum(
        y * scale_ref[...] + shift_ref[...], 0.0
    ).astype(o_ref.dtype)


def _im2col(x, kh, kw, stride, padding):
    # x: [N, Cin, H, W] (already bf16) -> patches: [N*Ho*Wo, Cin*kh*kw]; flattening order
    # matches weight.reshape(Cout, Cin*kh*kw).
    n, cin, h, w = x.shape
    ho = (h + 2 * padding - kh) // stride + 1
    wo = (w + 2 * padding - kw) // stride + 1
    xp = jnp.pad(x, ((0, 0), (0, 0), (padding, padding), (padding, padding)))
    cols = []
    for i in range(kh):
        for j in range(kw):
            cols.append(
                xp[:, :, i:i + (ho - 1) * stride + 1:stride,
                         j:j + (wo - 1) * stride + 1:stride])
    patches = jnp.stack(cols, axis=2)                        # [N, Cin, kh*kw, Ho, Wo]
    patches = patches.transpose(0, 3, 4, 1, 2).reshape(n * ho * wo, cin * kh * kw)
    return patches, ho, wo


@functools.partial(jax.jit, static_argnames=("stride", "padding"))
def conv_bn_relu(x, weight, bias, gamma, beta, *, stride=1, padding=1):
    """x: [N,Cin,H,W]; weight: [Cout,Cin,KH,KW]. Returns [N,Cout,Ho,Wo] (f32).

    `bias` is accepted for API parity with nn.Conv2d(bias=True) but not applied:
    train-mode BatchNorm's batch-mean subtraction cancels it exactly.
    """
    del bias
    n, cin, _, _ = x.shape
    cout, _, kh, kw = weight.shape

    # bf16 BEFORE im2col: the whole XLA im2col chain moves half the bytes and the
    # separate full-patch-matrix cast pass disappears.
    patches, ho, wo = _im2col(x.astype(jnp.bfloat16), kh, kw, stride, padding)
    m, k = patches.shape

    k_pad = _pad_dim(k)
    c_pad = _pad_dim(cout)
    vmem_limit = _vmem_limit_bytes()
    tm = _pick_tm(m, k_pad, c_pad, vmem_limit)
    m_pad = _round_up(m, tm)
    grid_m = m_pad // tm

    # Single fused zero-pad (rows + K) of the bf16 patch matrix; lane-dense operands.
    patches_p = jnp.pad(patches, ((0, m_pad - m), (0, k_pad - k)))
    w_p = jnp.pad(weight.astype(jnp.bfloat16).reshape(cout, cin * kh * kw).T,
                  ((0, k_pad - k), (0, c_pad - cout)))

    compiler_params = pltpu.CompilerParams(
        dimension_semantics=("parallel",), vmem_limit_bytes=vmem_limit)

    # ---- pass 1: stats only (per-tile partial sums; fully parallel) ----------------
    cost1 = pl.CostEstimate(
        flops=2 * m_pad * k_pad * c_pad + 3 * m_pad * c_pad,
        transcendentals=0,
        bytes_accessed=(m_pad * k_pad * 2 + k_pad * c_pad * 2
                        + 2 * grid_m * _SUB * c_pad * 4),
    )
    part_sum, part_sq = pl.pallas_call(
        _conv_stats_kernel,
        out_shape=(
            jax.ShapeDtypeStruct((grid_m * _SUB, c_pad), jnp.float32),
            jax.ShapeDtypeStruct((grid_m * _SUB, c_pad), jnp.float32),
        ),
        grid=(grid_m,),
        in_specs=[
            pl.BlockSpec((tm, k_pad), lambda i: (i, 0)),
            pl.BlockSpec((k_pad, c_pad), lambda i: (0, 0)),
        ],
        out_specs=(
            pl.BlockSpec((_SUB, c_pad), lambda i: (i, 0)),
            pl.BlockSpec((_SUB, c_pad), lambda i: (i, 0)),
        ),
        compiler_params=compiler_params,
        cost_estimate=cost1,
    )(patches_p, w_p)

    # ---- tiny per-channel glue: fold BN into one scale/shift ------------------------
    # Zero-padded patch rows contribute 0 to both sums; dividing by the *real* row count
    # gives exact batch statistics.  Padded weight columns are zero, so padded-channel
    # stats are 0 (no garbage / NaN) and get sliced away below.
    count = jnp.float32(m)
    ch_sum = jnp.sum(part_sum, axis=0)
    ch_sq = jnp.sum(part_sq, axis=0)
    mean = ch_sum / count
    var = jnp.maximum(ch_sq / count - mean * mean, 0.0)      # biased variance
    inv = lax.rsqrt(var + EPS)                               # once per channel
    gamma_p = jnp.pad(gamma.astype(jnp.float32), (0, c_pad - cout), constant_values=1.0)
    beta_p = jnp.pad(beta.astype(jnp.float32), (0, c_pad - cout))
    scale = (gamma_p * inv).reshape(1, c_pad)
    shift = (beta_p - mean * gamma_p * inv).reshape(1, c_pad)

    # ---- pass 2: fused conv + BN scale/shift + ReLU (fully parallel) ----------------
    cost2 = pl.CostEstimate(
        flops=2 * m_pad * k_pad * c_pad + 3 * m_pad * c_pad,
        transcendentals=0,
        bytes_accessed=(m_pad * k_pad * 2 + k_pad * c_pad * 2
                        + 2 * c_pad * 4 + m_pad * c_pad * 4),
    )
    out2d = pl.pallas_call(
        _conv_bn_relu_kernel,
        out_shape=jax.ShapeDtypeStruct((m_pad, c_pad), jnp.float32),
        grid=(grid_m,),
        in_specs=[
            pl.BlockSpec((tm, k_pad), lambda i: (i, 0)),
            pl.BlockSpec((k_pad, c_pad), lambda i: (0, 0)),
            pl.BlockSpec((1, c_pad), lambda i: (0, 0)),
            pl.BlockSpec((1, c_pad), lambda i: (0, 0)),
        ],
        out_specs=pl.BlockSpec((tm, c_pad), lambda i: (i, 0)),
        compiler_params=compiler_params,
        cost_estimate=cost2,
    )(patches_p, w_p, scale, shift)

    # [M, Cout] (lane-dense) -> [N, Ho, Wo, Cout] -> NCHW to match the module contract.
    return out2d[:m, :cout].reshape(n, ho, wo, cout).transpose(0, 3, 1, 2)


def _reference(x, weight, bias, gamma, beta, stride, padding, conv_dtype=jnp.float32):
    y = lax.conv_general_dilated(
        x.astype(conv_dtype), weight.astype(conv_dtype),
        window_strides=(stride, stride),
        padding=[(padding, padding), (padding, padding)],
        dimension_numbers=("NCHW", "OIHW", "NCHW"),
        preferred_element_type=jnp.float32)
    y = y + bias.reshape(1, -1, 1, 1)                        # kept here; BN cancels it
    mean = jnp.mean(y, axis=(0, 2, 3), keepdims=True)
    var = jnp.mean((y - mean) ** 2, axis=(0, 2, 3), keepdims=True)
    y = (y - mean) * lax.rsqrt(var + EPS)
    y = y * gamma.reshape(1, -1, 1, 1) + beta.reshape(1, -1, 1, 1)
    return jnp.maximum(y, 0.0)


if __name__ == "__main__":
    # ConvBnRelu(in_channels=4, out_channels=8, kernel_size=3, stride=1, padding=1, bias=True)
    N, CIN, H, W = 2, 4, 16, 16
    COUT, KH, KW = 8, 3, 3
    STRIDE, PAD = 1, 1

    key = jax.random.PRNGKey(0)
    kx, kw_, kb, kg, kbt = jax.random.split(key, 5)
    x = jax.random.normal(kx, (N, CIN, H, W), dtype=jnp.float32)
    weight = jax.random.normal(kw_, (COUT, CIN, KH, KW), dtype=jnp.float32) * 0.1
    bias = jax.random.normal(kb, (COUT,), dtype=jnp.float32) * 0.1
    gamma = 1.0 + 0.1 * jax.random.normal(kg, (COUT,), dtype=jnp.float32)
    beta = 0.1 * jax.random.normal(kbt, (COUT,), dtype=jnp.float32)

    out = conv_bn_relu(x, weight, bias, gamma, beta, stride=STRIDE, padding=PAD)
    out = jax.block_until_ready(out)
    assert out.shape == (N, COUT, H, W), out.shape

    # Tight check vs a reference with the same bf16 conv operands (validates the kernel).
    ref_bf16 = _reference(x, weight, bias, gamma, beta, STRIDE, PAD, conv_dtype=jnp.bfloat16)
    assert jnp.allclose(out, ref_bf16, rtol=1e-3, atol=1e-3), \
        float(jnp.max(jnp.abs(out - ref_bf16)))
    # Looser check vs the full-precision (f32-conv) spec; slack is the bf16 MXU-operand cast.
    ref_f32 = _reference(x, weight, bias, gamma, beta, STRIDE, PAD, conv_dtype=jnp.float32)
    assert jnp.allclose(out, ref_f32, rtol=2e-2, atol=2e-2), \
        float(jnp.max(jnp.abs(out - ref_f32)))

    print("KERNEL_OK")
</pallas_src>

<mosaic_0001>
module attributes {stable_mosaic.version = 11 : i64} {
  func.func @_conv_stats_kernel(%arg0: i32, %arg1: memref<512x128xbf16, #tpu.memory_space<vmem>>, %arg2: memref<128x128xbf16, #tpu.memory_space<vmem>>, %arg3: memref<8x128xf32, #tpu.memory_space<vmem>>, %arg4: memref<8x128xf32, #tpu.memory_space<vmem>>) attributes {dimension_semantics = [#tpu.dimension_semantics<parallel>], iteration_bounds = array<i64: 1>, scalar_prefetch = 0 : i64, scratch_operands = 0 : i64, tpu.core_type = #tpu.core_type<tc>, window_params = [{transform_indices = @transform_0, window_bounds = array<i64: 512, 128>}, {pipeline_mode = #tpu.pipeline_mode<synchronous>, transform_indices = @transform_1, window_bounds = array<i64: 128, 128>}, {transform_indices = @transform_2, window_bounds = array<i64: 8, 128>}, {transform_indices = @transform_3, window_bounds = array<i64: 8, 128>}]} {
    %c0 = arith.constant 0 : index
    %c0_0 = arith.constant 0 : index
    %0 = vector.load %arg1[%c0, %c0_0] : memref<512x128xbf16, #tpu.memory_space<vmem>>, vector<512x128xbf16>
    %c0_1 = arith.constant 0 : index
    %c0_2 = arith.constant 0 : index
    %1 = vector.load %arg2[%c0_1, %c0_2] : memref<128x128xbf16, #tpu.memory_space<vmem>>, vector<128x128xbf16>
    %cst = arith.constant dense<0.000000e+00> : vector<512x128xf32>
    %2 = tpu.matmul %0, %1, %cst {dimension_numbers = #tpu.dot_dimension_numbers<[1], [0], [0], [1], [0, 0, 1, 1], [], []>} : vector<512x128xbf16>, vector<128x128xbf16>, vector<512x128xf32> -> vector<512x128xf32>
    %cst_3 = arith.constant dense<0.000000e+00> : vector<128xf32>
    %3 = vector.multi_reduction <add>, %2, %cst_3 [0] : vector<512x128xf32> to vector<128xf32>
    %4 = vector.shape_cast %3 : vector<128xf32> to vector<1x128xf32>
    %5 = arith.mulf %2, %2 : vector<512x128xf32>
    %cst_4 = arith.constant dense<0.000000e+00> : vector<128xf32>
    %6 = vector.multi_reduction <add>, %5, %cst_4 [0] : vector<512x128xf32> to vector<128xf32>
    %7 = vector.shape_cast %6 : vector<128xf32> to vector<1x128xf32>
    %8 = tpu.iota {dimensions = array<i32: 0>} : vector<8x128xi32>
    %c0_i32 = arith.constant 0 : i32
    %9 = vector.broadcast %c0_i32 : i32 to vector<8x128xi32>
    %10 = arith.cmpi eq, %8, %9 : vector<8x128xi32>
    %11 = vector.shape_cast %4 : vector<1x128xf32> to vector<1x128xf32>
    %12 = vector.broadcast %11 : vector<1x128xf32> to vector<8x128xf32>
    %cst_5 = arith.constant 0.000000e+00 : f32
    %13 = vector.broadcast %cst_5 : f32 to vector<8x128xf32>
    %14 = arith.select %10, %12, %13 : vector<8x128xi1>, vector<8x128xf32>
    %c0_6 = arith.constant 0 : index
    %c0_7 = arith.constant 0 : index
    %15 = vector.load %arg3[%c0_6, %c0_7] : memref<8x128xf32, #tpu.memory_space<vmem>>, vector<8x128xf32>
    tpu.vector_store %arg3[%c0_6, %c0_7], %14 {strides = array<i32>} : memref<8x128xf32, #tpu.memory_space<vmem>>, vector<8x128xf32>,
    %16 = vector.shape_cast %7 : vector<1x128xf32> to vector<1x128xf32>
    %17 = vector.broadcast %16 : vector<1x128xf32> to vector<8x128xf32>
    %cst_8 = arith.constant 0.000000e+00 : f32
    %18 = vector.broadcast %cst_8 : f32 to vector<8x128xf32>
    %19 = arith.select %10, %17, %18 : vector<8x128xi1>, vector<8x128xf32>
    %c0_9 = arith.constant 0 : index
    %c0_10 = arith.constant 0 : index
    %20 = vector.load %arg4[%c0_9, %c0_10] : memref<8x128xf32, #tpu.memory_space<vmem>>, vector<8x128xf32>
    tpu.vector_store %arg4[%c0_9, %c0_10], %19 {strides = array<i32>} : memref<8x128xf32, #tpu.memory_space<vmem>>, vector<8x128xf32>,
    return
  }
  func.func @transform_0(%arg0: i32) -> (i32, i32) {
    %c0_i32 = arith.constant 0 : i32
    %c0_i32_0 = arith.constant 0 : i32
    return %arg0, %c0_i32 : i32, i32
  }
  func.func @transform_1(%arg0: i32) -> (i32, i32) {
    %c0_i32 = arith.constant 0 : i32
    %c0_i32_0 = arith.constant 0 : i32
    %c0_i32_1 = arith.constant 0 : i32
    return %c0_i32, %c0_i32_0 : i32, i32
  }
  func.func @transform_2(%arg0: i32) -> (i32, i32) {
    %c0_i32 = arith.constant 0 : i32
    %c0_i32_0 = arith.constant 0 : i32
    return %arg0, %c0_i32 : i32, i32
  }
  func.func @transform_3(%arg0: i32) -> (i32, i32) {
    %c0_i32 = arith.constant 0 : i32
    %c0_i32_0 = arith.constant 0 : i32
    return %arg0, %c0_i32 : i32, i32
  }
}

module attributes {stable_mosaic.version = 11 : i64} {
  func.func @_conv_bn_relu_kernel(%arg0: i32, %arg1: memref<512x128xbf16, #tpu.memory_space<vmem>>, %arg2: memref<128x128xbf16, #tpu.memory_space<vmem>>, %arg3: memref<1x128xf32, #tpu.memory_space<vmem>>, %arg4: memref<1x128xf32, #tpu.memory_space<vmem>>, %arg5: memref<512x128xf32, #tpu.memory_space<vmem>>) attributes {dimension_semantics = [#tpu.dimension_semantics<parallel>], iteration_bounds = array<i64: 1>, scalar_prefetch = 0 : i64, scratch_operands = 0 : i64, tpu.core_type = #tpu.core_type<tc>, window_params = [{transform_indices = @transform_0, window_bounds = array<i64: 512, 128>}, {pipeline_mode = #tpu.pipeline_mode<synchronous>, transform_indices = @transform_1, window_bounds = array<i64: 128, 128>}, {pipeline_mode = #tpu.pipeline_mode<synchronous>, transform_indices = @transform_2, window_bounds = array<i64: 1, 128>}, {pipeline_mode = #tpu.pipeline_mode<synchronous>, transform_indices = @transform_3, window_bounds = array<i64: 1, 128>}, {transform_indices = @transform_4, window_bounds = array<i64: 512, 128>}]} {
    %c0 = arith.constant 0 : index
    %c0_0 = arith.constant 0 : index
    %0 = vector.load %arg1[%c0, %c0_0] : memref<512x128xbf16, #tpu.memory_space<vmem>>, vector<512x128xbf16>
    %c0_1 = arith.constant 0 : index
    %c0_2 = arith.constant 0 : index
    %1 = vector.load %arg2[%c0_1, %c0_2] : memref<128x128xbf16, #tpu.memory_space<vmem>>, vector<128x128xbf16>
    %cst = arith.constant dense<0.000000e+00> : vector<512x128xf32>
    %2 = tpu.matmul %0, %1, %cst {dimension_numbers = #tpu.dot_dimension_numbers<[1], [0], [0], [1], [0, 0, 1, 1], [], []>} : vector<512x128xbf16>, vector<128x128xbf16>, vector<512x128xf32> -> vector<512x128xf32>
    %c0_3 = arith.constant 0 : index
    %c0_4 = arith.constant 0 : index
    %3 = vector.load %arg3[%c0_3, %c0_4] : memref<1x128xf32, #tpu.memory_space<vmem>>, vector<1x128xf32>
    %4 = vector.broadcast %3 : vector<1x128xf32> to vector<512x128xf32>
    %5 = arith.mulf %2, %4 : vector<512x128xf32>
    %c0_5 = arith.constant 0 : index
    %c0_6 = arith.constant 0 : index
    %6 = vector.load %arg4[%c0_5, %c0_6] : memref<1x128xf32, #tpu.memory_space<vmem>>, vector<1x128xf32>
    %7 = vector.broadcast %6 : vector<1x128xf32> to vector<512x128xf32>
    %8 = arith.addf %5, %7 : vector<512x128xf32>
    %cst_7 = arith.constant 0.000000e+00 : f32
    %9 = vector.broadcast %cst_7 : f32 to vector<512x128xf32>
    %10 = arith.maximumf %8, %9 : vector<512x128xf32>
    %c0_8 = arith.constant 0 : index
    %c0_9 = arith.constant 0 : index
    %11 = vector.load %arg5[%c0_8, %c0_9] : memref<512x128xf32, #tpu.memory_space<vmem>>, vector<512x128xf32>
    tpu.vector_store %arg5[%c0_8, %c0_9], %10 {strides = array<i32>} : memref<512x128xf32, #tpu.memory_space<vmem>>, vector<512x128xf32>,
    return
  }
  func.func @transform_0(%arg0: i32) -> (i32, i32) {
    %c0_i32 = arith.constant 0 : i32
    %c0_i32_0 = arith.constant 0 : i32
    return %arg0, %c0_i32 : i32, i32
  }
  func.func @transform_1(%arg0: i32) -> (i32, i32) {
    %c0_i32 = arith.constant 0 : i32
    %c0_i32_0 = arith.constant 0 : i32
    %c0_i32_1 = arith.constant 0 : i32
    return %c0_i32, %c0_i32_0 : i32, i32
  }
  func.func @transform_2(%arg0: i32) -> (i32, i32) {
    %c0_i32 = arith.constant 0 : i32
    %c0_i32_0 = arith.constant 0 : i32
    %c0_i32_1 = arith.constant 0 : i32
    return %c0_i32, %c0_i32_0 : i32, i32
  }
  func.func @transform_3(%arg0: i32) -> (i32, i32) {
    %c0_i32 = arith.constant 0 : i32
    %c0_i32_0 = arith.constant 0 : i32
    %c0_i32_1 = arith.constant 0 : i32
    return %c0_i32, %c0_i32_0 : i32, i32
  }
  func.func @transform_4(%arg0: i32) -> (i32, i32) {
    %c0_i32 = arith.constant 0 : i32
    %c0_i32_0 = arith.constant 0 : i32
    return %arg0, %c0_i32 : i32, i32
  }
}

</mosaic_0001>

<llo_original>
// kernel: conv_bn_relu.2
$region0: #{conv_bn_relu.2}
  #allocation0 [shape = 'u32[]', space=smem, size = 0x4, offset = 0x4, fixed_abs, tag = 'smem constant byte address 0x4 - core index']
  #allocation1 [shape = 'u32[144,128]{1,0:T(1,128)}', space=vmem, size = 0x12000, scoped, tag = 'internal scratch']
  %s0 = inlined_call_operand.vmem [shape: bf16[512,128], index: 0, kind: input, shape index: {}]
  %s1 = inlined_call_operand.vmem [shape: bf16[128,128], index: 1, kind: input, shape index: {}]
  %s2 = inlined_call_operand.vmem [shape: f32[8,128], index: 2, kind: output, shape index: {0}]
  %s3 = inlined_call_operand.vmem [shape: f32[8,128], index: 3, kind: output, shape index: {1}]
  %4 = xla_tuple %s2, %s3
  %s5 = sld [smem:[#allocation0]]
  $region26: #{conv_bn_relu.2} parent=0
    _
  %s7 = ssub.s32 1, %s5
  %s8 = scalar_select 0, %s7, %s5
  // Predicated region
  $region2: #{conv_bn_relu.2} parent=0 // pred_check
    _
  $region3: #{conv_bn_relu.2} parent=0 // pred_check_branch
    %10 = sbr.rel (0) target = $region5
  $region4: #{conv_bn_relu.2} parent=0 // pred_region
    _
  $region5: #{conv_bn_relu.2} parent=0 // pred_fallthru
    _
  // Predicated region
  $region6: #{conv_bn_relu.2} parent=0 // pred_check
    _
  $region7: #{conv_bn_relu.2} parent=0 // pred_check_branch
    %12 = sbr.rel (0) target = $region9
  $region8: #{conv_bn_relu.2} parent=0 // pred_region
    _
  $region9: #{conv_bn_relu.2} parent=0 // pred_fallthru
    _
  %v14 = vld [vmem:[%s0] sm:$0xf]
  %v15 = vld [vmem:[%s0 + $0x4] sm:$0xf]
  %v16 = vld [vmem:[%s0 + $0x8] sm:$0xf]
  %v17 = vld [vmem:[%s0 + $0xc] sm:$0xf]
  %v18 = vld [vmem:[%s0 + $0x10] sm:$0xf]
  %v19 = vld [vmem:[%s0 + $0x14] sm:$0xf]
  %v20 = vld [vmem:[%s0 + $0x18] sm:$0xf]
  %v21 = vld [vmem:[%s0 + $0x1c] sm:$0xf]
  %v22 = vld [vmem:[%s0 + $0x20] sm:$0xf]
  %v23 = vld [vmem:[%s0 + $0x24] sm:$0xf]
  %v24 = vld [vmem:[%s0 + $0x28] sm:$0xf]
  %v25 = vld [vmem:[%s0 + $0x2c] sm:$0xf]
  %v26 = vld [vmem:[%s0 + $0x30] sm:$0xf]
  %v27 = vld [vmem:[%s0 + $0x34] sm:$0xf]
  %v28 = vld [vmem:[%s0 + $0x38] sm:$0xf]
  %v29 = vld [vmem:[%s0 + $0x3c] sm:$0xf]
  %v30 = vld [vmem:[%s0 + $0x40] sm:$0xf]
  %v31 = vld [vmem:[%s0 + $0x44] sm:$0xf]
  %v32 = vld [vmem:[%s0 + $0x48] sm:$0xf]
  %v33 = vld [vmem:[%s0 + $0x4c] sm:$0xf]
  %v34 = vld [vmem:[%s0 + $0x50] sm:$0xf]
  %v35 = vld [vmem:[%s0 + $0x54] sm:$0xf]
  %v36 = vld [vmem:[%s0 + $0x58] sm:$0xf]
  %v37 = vld [vmem:[%s0 + $0x5c] sm:$0xf]
  %v38 = vld [vmem:[%s0 + $0x60] sm:$0xf]
  %v39 = vld [vmem:[%s0 + $0x64] sm:$0xf]
  %v40 = vld [vmem:[%s0 + $0x68] sm:$0xf]
  %v41 = vld [vmem:[%s0 + $0x6c] sm:$0xf]
  %v42 = vld [vmem:[%s0 + $0x70] sm:$0xf]
  %v43 = vld [vmem:[%s0 + $0x74] sm:$0xf]
  %v44 = vld [vmem:[%s0 + $0x78] sm:$0xf]
  %v45 = vld [vmem:[%s0 + $0x7c] sm:$0xf]
  %v46 = vld [vmem:[%s0 + $0x80] sm:$0xf]
  %v47 = vld [vmem:[%s0 + $0x84] sm:$0xf]
  %v48 = vld [vmem:[%s0 + $0x88] sm:$0xf]
  %v49 = vld [vmem:[%s0 + $0x8c] sm:$0xf]
  %v50 = vld [vmem:[%s0 + $0x90] sm:$0xf]
  %v51 = vld [vmem:[%s0 + $0x94] sm:$0xf]
  %v52 = vld [vmem:[%s0 + $0x98] sm:$0xf]
  %v53 = vld [vmem:[%s0 + $0x9c] sm:$0xf]
  %v54 = vld [vmem:[%s0 + $0xa0] sm:$0xf]
  %v55 = vld [vmem:[%s0 + $0xa4] sm:$0xf]
  %v56 = vld [vmem:[%s0 + $0xa8] sm:$0xf]
  %v57 = vld [vmem:[%s0 + $0xac] sm:$0xf]
  %v58 = vld [vmem:[%s0 + $0xb0] sm:$0xf]
  %v59 = vld [vmem:[%s0 + $0xb4] sm:$0xf]
  %v60 = vld [vmem:[%s0 + $0xb8] sm:$0xf]
  %v61 = vld [vmem:[%s0 + $0xbc] sm:$0xf]
  %v62 = vld [vmem:[%s0 + $0xc0] sm:$0xf]
  %v63 = vld [vmem:[%s0 + $0xc4] sm:$0xf]
  %v64 = vld [vmem:[%s0 + $0xc8] sm:$0xf]
  %v65 = vld [vmem:[%s0 + $0xcc] sm:$0xf]
  %v66 = vld [vmem:[%s0 + $0xd0] sm:$0xf]
  %v67 = vld [vmem:[%s0 + $0xd4] sm:$0xf]
  %v68 = vld [vmem:[%s0 + $0xd8] sm:$0xf]
  %v69 = vld [vmem:[%s0 + $0xdc] sm:$0xf]
  %v70 = vld [vmem:[%s0 + $0xe0] sm:$0xf]
  %v71 = vld [vmem:[%s0 + $0xe4] sm:$0xf]
  %v72 = vld [vmem:[%s0 + $0xe8] sm:$0xf]
  %v73 = vld [vmem:[%s0 + $0xec] sm:$0xf]
  %v74 = vld [vmem:[%s0 + $0xf0] sm:$0xf]
  %v75 = vld [vmem:[%s0 + $0xf4] sm:$0xf]
  %v76 = vld [vmem:[%s0 + $0xf8] sm:$0xf]
  %v77 = vld [vmem:[%s0 + $0xfc] sm:$0xf]
  %v78 = vld [vmem:[%s1] sm:$0xf]
  %v79 = vld [vmem:[%s1 + $0x4] sm:$0xf]
  %v80 = vld [vmem:[%s1 + $0x8] sm:$0xf]
  %v81 = vld [vmem:[%s1 + $0xc] sm:$0xf]
  %v82 = vld [vmem:[%s1 + $0x10] sm:$0xf]
  %v83 = vld [vmem:[%s1 + $0x14] sm:$0xf]
  %v84 = vld [vmem:[%s1 + $0x18] sm:$0xf]
  %v85 = vld [vmem:[%s1 + $0x1c] sm:$0xf]
  %v86 = vld [vmem:[%s1 + $0x20] sm:$0xf]
  %v87 = vld [vmem:[%s1 + $0x24] sm:$0xf]
  %v88 = vld [vmem:[%s1 + $0x28] sm:$0xf]
  %v89 = vld [vmem:[%s1 + $0x2c] sm:$0xf]
  %v90 = vld [vmem:[%s1 + $0x30] sm:$0xf]
  %v91 = vld [vmem:[%s1 + $0x34] sm:$0xf]
  %v92 = vld [vmem:[%s1 + $0x38] sm:$0xf]
  %v93 = vld [vmem:[%s1 + $0x3c] sm:$0xf]
  %v158 = vunpack.c.l.b16 %v14
  %v159 = vunpack.c.l.b16 %v15
  %v160 = vunpack.c.l.b16 %v16
  %v161 = vunpack.c.l.b16 %v17
  %v162 = vunpack.c.l.b16 %v18
  %v163 = vunpack.c.l.b16 %v19
  %v164 = vunpack.c.l.b16 %v20
  %v165 = vunpack.c.l.b16 %v21
  %v166 = vunpack.c.l.b16 %v22
  %v167 = vunpack.c.l.b16 %v23
  %v168 = vunpack.c.l.b16 %v24
  %v169 = vunpack.c.l.b16 %v25
  %v170 = vunpack.c.l.b16 %v26
  %v171 = vunpack.c.l.b16 %v27
  %v172 = vunpack.c.l.b16 %v28
  %v173 = vunpack.c.l.b16 %v29
  %v174 = vunpack.c.l.b16 %v30
  %v175 = vunpack.c.l.b16 %v31
  %v176 = vunpack.c.l.b16 %v32
  %v177 = vunpack.c.l.b16 %v33
  %v178 = vunpack.c.l.b16 %v34
  %v179 = vunpack.c.l.b16 %v35
  %v180 = vunpack.c.l.b16 %v36
  %v181 = vunpack.c.l.b16 %v37
  %v182 = vunpack.c.l.b16 %v38
  %v183 = vunpack.c.l.b16 %v39
  %v184 = vunpack.c.l.b16 %v40
  %v185 = vunpack.c.l.b16 %v41
  %v186 = vunpack.c.l.b16 %v42
  %v187 = vunpack.c.l.b16 %v43
  %v188 = vunpack.c.l.b16 %v44
  %v189 = vunpack.c.l.b16 %v45
  %v190 = vunpack.c.l.b16 %v46
  %v191 = vunpack.c.l.b16 %v47
  %v192 = vunpack.c.l.b16 %v48
  %v193 = vunpack.c.l.b16 %v49
  %v194 = vunpack.c.l.b16 %v50
  %v195 = vunpack.c.l.b16 %v51
  %v196 = vunpack.c.l.b16 %v52
  %v197 = vunpack.c.l.b16 %v53
  %v198 = vunpack.c.l.b16 %v54
  %v199 = vunpack.c.l.b16 %v55
  %v200 = vunpack.c.l.b16 %v56
  %v201 = vunpack.c.l.b16 %v57
  %v202 = vunpack.c.l.b16 %v58
  %v203 = vunpack.c.l.b16 %v59
  %v204 = vunpack.c.l.b16 %v60
  %v205 = vunpack.c.l.b16 %v61
  %v206 = vunpack.c.l.b16 %v62
  %v207 = vunpack.c.l.b16 %v63
  %v208 = vunpack.c.l.b16 %v64
  %v209 = vunpack.c.l.b16 %v65
  %v210 = vunpack.c.l.b16 %v66
  %v211 = vunpack.c.l.b16 %v67
  %v212 = vunpack.c.l.b16 %v68
  %v213 = vunpack.c.l.b16 %v69
  %v214 = vunpack.c.l.b16 %v70
  %v215 = vunpack.c.l.b16 %v71
  %v216 = vunpack.c.l.b16 %v72
  %v217 = vunpack.c.l.b16 %v73
  %v218 = vunpack.c.l.b16 %v74
  %v219 = vunpack.c.l.b16 %v75
  %v220 = vunpack.c.l.b16 %v76
  %v221 = vunpack.c.l.b16 %v77
  %v222 = vpack.c.b16 %v159, %v158
  %v223 = vpack.c.b16 %v161, %v160
  %v224 = vpack.c.b16 %v163, %v162
  %v225 = vpack.c.b16 %v165, %v164
  %v226 = vpack.c.b16 %v167, %v166
  %v227 = vpack.c.b16 %v169, %v168
  %v228 = vpack.c.b16 %v171, %v170
  %v229 = vpack.c.b16 %v173, %v172
  %v230 = vpack.c.b16 %v175, %v174
  %v231 = vpack.c.b16 %v177, %v176
  %v232 = vpack.c.b16 %v179, %v178
  %v233 = vpack.c.b16 %v181, %v180
  %v234 = vpack.c.b16 %v183, %v182
  %v235 = vpack.c.b16 %v185, %v184
  %v236 = vpack.c.b16 %v187, %v186
  %v237 = vpack.c.b16 %v189, %v188
  %v238 = vpack.c.b16 %v191, %v190
  %v239 = vpack.c.b16 %v193, %v192
  %v240 = vpack.c.b16 %v195, %v194
  %v241 = vpack.c.b16 %v197, %v196
  %v242 = vpack.c.b16 %v199, %v198
  %v243 = vpack.c.b16 %v201, %v200
  %v244 = vpack.c.b16 %v203, %v202
  %v245 = vpack.c.b16 %v205, %v204
  %v246 = vpack.c.b16 %v207, %v206
  %v247 = vpack.c.b16 %v209, %v208
  %v248 = vpack.c.b16 %v211, %v210
  %v249 = vpack.c.b16 %v213, %v212
  %v250 = vpack.c.b16 %v215, %v214
  %v251 = vpack.c.b16 %v217, %v216
  %v252 = vpack.c.b16 %v219, %v218
  %v253 = vpack.c.b16 %v221, %v220
  %v302 = vunpack.c.l.b16 %v78
  %v303 = vunpack.c.l.b16 %v79
  %v304 = vunpack.c.l.b16 %v80
  %v305 = vunpack.c.l.b16 %v81
  %v306 = vunpack.c.l.b16 %v82
  %v307 = vunpack.c.l.b16 %v83
  %v308 = vunpack.c.l.b16 %v84
  %v309 = vunpack.c.l.b16 %v85
  %v310 = vunpack.c.l.b16 %v86
  %v311 = vunpack.c.l.b16 %v87
  %v312 = vunpack.c.l.b16 %v88
  %v313 = vunpack.c.l.b16 %v89
  %v314 = vunpack.c.l.b16 %v90
  %v315 = vunpack.c.l.b16 %v91
  %v316 = vunpack.c.l.b16 %v92
  %v317 = vunpack.c.l.b16 %v93
  %v318 = vpack.c.b16 %v303, %v302
  %v319 = vpack.c.b16 %v305, %v304
  %v320 = vpack.c.b16 %v307, %v306
  %v321 = vpack.c.b16 %v309, %v308
  %v322 = vpack.c.b16 %v311, %v310
  %v323 = vpack.c.b16 %v313, %v312
  %v324 = vpack.c.b16 %v315, %v314
  %v325 = vpack.c.b16 %v317, %v316
  %334 = vmatprep.subr.bf16.mxu0 0
  %335 = vmatpush1.bf16.msra.mxu0 %v318
  %336 = vmatprep.subr.bf16.mxu0 0
  %337 = vmatpush1.bf16.msra.mxu0 %v319
  %338 = vmatprep.subr.bf16.mxu0 0
  %339 = vmatpush1.bf16.msra.mxu0 %v320
  %340 = vmatprep.subr.bf16.mxu0 0
  %341 = vmatpush1.bf16.msra.mxu0 %v321
  %342 = vmatprep.subr.bf16.mxu0 0
  %343 = vmatpush1.bf16.msra.mxu0 %v322
  %344 = vmatprep.subr.bf16.mxu0 0
  %345 = vmatpush1.bf16.msra.mxu0 %v323
  %346 = vmatprep.subr.bf16.mxu0 0
  %347 = vmatpush1.bf16.msra.mxu0 %v324
  %348 = vmatprep.subr.bf16.mxu0 0
  %349 = vmatpush1.bf16.msra.mxu0 %v325
  %350 = vmatprep.subr.bf16.mxu0 0
  %351 = vmatpush1.bf16.msra.mxu0 0
  %352 = vmatprep.subr.bf16.mxu0 0
  %353 = vmatpush1.bf16.msra.mxu0 0
  %354 = vmatprep.subr.bf16.mxu0 0
  %355 = vmatpush1.bf16.msra.mxu0 0
  %356 = vmatprep.subr.bf16.mxu0 0
  %357 = vmatpush1.bf16.msra.mxu0 0
  %358 = vmatprep.subr.bf16.mxu0 0
  %359 = vmatpush1.bf16.msra.mxu0 0
  %360 = vmatprep.subr.bf16.mxu0 0
  %361 = vmatpush1.bf16.msra.mxu0 0
  %362 = vmatprep.subr.bf16.mxu0 0
  %363 = vmatpush1.bf16.msra.mxu0 0
  %364 = vmatprep.subr.bf16.mxu0 0
  %365 = vmatpush1.bf16.msra.mxu0 0
  %366 = vmatprep.mubr.bf16.mxu0 0
  %367 = vmatmul.mubr.bf16.gmra.mrb[0].mxu0 %v222
  %v368 = vpop.f32.mrb[0].mxu0
  %v369 = vadd.f32 0.0, %v368
  %v370 = vpop.f32.mrb[0].mxu0
  %v371 = vpop.f32.mrb[0].mxu0
  %v372 = vadd.f32 0.0, %v371
  %v373 = vpop.f32.mrb[0].mxu0
  %374 = vmatprep.mubr.bf16.mxu0 0
  %375 = vmatmul.mubr.bf16.gmra.mrb[0].mxu0 %v223
  %v376 = vpop.f32.mrb[0].mxu0
  %v377 = vadd.f32 0.0, %v376
  %v378 = vpop.f32.mrb[0].mxu0
  %v379 = vpop.f32.mrb[0].mxu0
  %v380 = vadd.f32 0.0, %v379
  %v381 = vpop.f32.mrb[0].mxu0
  %382 = vmatprep.mubr.bf16.mxu0 0
  %383 = vmatmul.mubr.bf16.gmra.mrb[0].mxu0 %v224
  %v384 = vpop.f32.mrb[0].mxu0
  %v385 = vadd.f32 0.0, %v384
  %v386 = vpop.f32.mrb[0].mxu0
  %v387 = vpop.f32.mrb[0].mxu0
  %v388 = vadd.f32 0.0, %v387
  %v389 = vpop.f32.mrb[0].mxu0
  %390 = vmatprep.mubr.bf16.mxu0 0
  %391 = vmatmul.mubr.bf16.gmra.mrb[0].mxu0 %v225
  %v392 = vpop.f32.mrb[0].mxu0
  %v393 = vadd.f32 0.0, %v392
  %v394 = vpop.f32.mrb[0].mxu0
  %v395 = vpop.f32.mrb[0].mxu0
  %v396 = vadd.f32 0.0, %v395
  %v397 = vpop.f32.mrb[0].mxu0
  %398 = vmatprep.mubr.bf16.mxu0 0
  %399 = vmatmul.mubr.bf16.gmra.mrb[0].mxu0 %v226
  %v400 = vpop.f32.mrb[0].mxu0
  %v401 = vadd.f32 0.0, %v400
  %v402 = vpop.f32.mrb[0].mxu0
  %v403 = vpop.f32.mrb[0].mxu0
  %v404 = vadd.f32 0.0, %v403
  %v405 = vpop.f32.mrb[0].mxu0
  %406 = vmatprep.mubr.bf16.mxu0 0
  %407 = vmatmul.mubr.bf16.gmra.mrb[0].mxu0 %v227
  %v408 = vpop.f32.mrb[0].mxu0
  %v409 = vadd.f32 0.0, %v408
  %v410 = vpop.f32.mrb[0].mxu0
  %v411 = vpop.f32.mrb[0].mxu0
  %v412 = vadd.f32 0.0, %v411
  %v413 = vpop.f32.mrb[0].mxu0
  %414 = vmatprep.mubr.bf16.mxu0 0
  %415 = vmatmul.mubr.bf16.gmra.mrb[0].mxu0 %v228
  %v416 = vpop.f32.mrb[0].mxu0
  %v417 = vadd.f32 0.0, %v416
  %v418 = vpop.f32.mrb[0].mxu0
  %v419 = vpop.f32.mrb[0].mxu0
  %v420 = vadd.f32 0.0, %v419
  %v421 = vpop.f32.mrb[0].mxu0
  %422 = vmatprep.mubr.bf16.mxu0 0
  %423 = vmatmul.mubr.bf16.gmra.mrb[0].mxu0 %v229
  %v424 = vpop.f32.mrb[0].mxu0
  %v425 = vadd.f32 0.0, %v424
  %v426 = vpop.f32.mrb[0].mxu0
  %v427 = vpop.f32.mrb[0].mxu0
  %v428 = vadd.f32 0.0, %v427
  %v429 = vpop.f32.mrb[0].mxu0
  %430 = vmatprep.mubr.bf16.mxu0 0
  %431 = vmatmul.mubr.bf16.gmra.mrb[0].mxu0 %v230
  %v432 = vpop.f32.mrb[0].mxu0
  %v433 = vadd.f32 0.0, %v432
  %v434 = vpop.f32.mrb[0].mxu0
  %v435 = vpop.f32.mrb[0].mxu0
  %v436 = vadd.f32 0.0, %v435
  %v437 = vpop.f32.mrb[0].mxu0
  %438 = vmatprep.mubr.bf16.mxu0 0
  %439 = vmatmul.mubr.bf16.gmra.mrb[0].mxu0 %v231
  %v440 = vpop.f32.mrb[0].mxu0
  %v441 = vadd.f32 0.0, %v440
  %v442 = vpop.f32.mrb[0].mxu0
  %v443 = vpop.f32.mrb[0].mxu0
  %v444 = vadd.f32 0.0, %v443
  %v445 = vpop.f32.mrb[0].mxu0
  %446 = vmatprep.mubr.bf16.mxu0 0
  %447 = vmatmul.mubr.bf16.gmra.mrb[0].mxu0 %v232
  %v448 = vpop.f32.mrb[0].mxu0
  %v449 = vadd.f32 0.0, %v448
  %v450 = vpop.f32.mrb[0].mxu0
  %v451 = vpop.f32.mrb[0].mxu0
  %v452 = vadd.f32 0.0, %v451
  %v453 = vpop.f32.mrb[0].mxu0
  %454 = vmatprep.mubr.bf16.mxu0 0
  %455 = vmatmul.mubr.bf16.gmra.mrb[0].mxu0 %v233
  %v456 = vpop.f32.mrb[0].mxu0
  %v457 = vadd.f32 0.0, %v456
  %v458 = vpop.f32.mrb[0].mxu0
  %v459 = vpop.f32.mrb[0].mxu0
  %v460 = vadd.f32 0.0, %v459
  %v461 = vpop.f32.mrb[0].mxu0
  %462 = vmatprep.mubr.bf16.mxu0 0
  %463 = vmatmul.mubr.bf16.gmra.mrb[0].mxu0 %v234
  %v464 = vpop.f32.mrb[0].mxu0
  %v465 = vadd.f32 0.0, %v464
  %v466 = vpop.f32.mrb[0].mxu0
  %v467 = vpop.f32.mrb[0].mxu0
  %v468 = vadd.f32 0.0, %v467
  %v469 = vpop.f32.mrb[0].mxu0
  %470 = vmatprep.mubr.bf16.mxu0 0
  %471 = vmatmul.mubr.bf16.gmra.mrb[0].mxu0 %v235
  %v472 = vpop.f32.mrb[0].mxu0
  %v473 = vadd.f32 0.0, %v472
  %v474 = vpop.f32.mrb[0].mxu0
  %v475 = vpop.f32.mrb[0].mxu0
  %v476 = vadd.f32 0.0, %v475
  %v477 = vpop.f32.mrb[0].mxu0
  %478 = vmatprep.mubr.bf16.mxu0 0
  %479 = vmatmul.mubr.bf16.gmra.mrb[0].mxu0 %v236
  %v480 = vpop.f32.mrb[0].mxu0
  %v481 = vadd.f32 0.0, %v480
  %v482 = vpop.f32.mrb[0].mxu0
  %v483 = vpop.f32.mrb[0].mxu0
  %v484 = vadd.f32 0.0, %v483
  %v485 = vpop.f32.mrb[0].mxu0
  %486 = vmatprep.mubr.bf16.mxu0 0
  %487 = vmatmul.mubr.bf16.gmra.mrb[0].mxu0 %v237
  %v488 = vpop.f32.mrb[0].mxu0
  %v489 = vadd.f32 0.0, %v488
  %v490 = vpop.f32.mrb[0].mxu0
  %v491 = vpop.f32.mrb[0].mxu0
  %v492 = vadd.f32 0.0, %v491
  %v493 = vpop.f32.mrb[0].mxu0
  %494 = vmatprep.mubr.bf16.mxu0 0
  %495 = vmatmul.mubr.bf16.gmra.mrb[0].mxu0 %v238
  %v496 = vpop.f32.mrb[0].mxu0
  %v497 = vadd.f32 0.0, %v496
  %v498 = vpop.f32.mrb[0].mxu0
  %v499 = vpop.f32.mrb[0].mxu0
  %v500 = vadd.f32 0.0, %v499
  %v501 = vpop.f32.mrb[0].mxu0
  %502 = vmatprep.mubr.bf16.mxu0 0
  %503 = vmatmul.mubr.bf16.gmra.mrb[0].mxu0 %v239
  %v504 = vpop.f32.mrb[0].mxu0
  %v505 = vadd.f32 0.0, %v504
  %v506 = vpop.f32.mrb[0].mxu0
  %v507 = vpop.f32.mrb[0].mxu0
  %v508 = vadd.f32 0.0, %v507
  %v509 = vpop.f32.mrb[0].mxu0
  %510 = vmatprep.mubr.bf16.mxu0 0
  %511 = vmatmul.mubr.bf16.gmra.mrb[0].mxu0 %v240
  %v512 = vpop.f32.mrb[0].mxu0
  %v513 = vadd.f32 0.0, %v512
  %v514 = vpop.f32.mrb[0].mxu0
  %v515 = vpop.f32.mrb[0].mxu0
  %v516 = vadd.f32 0.0, %v515
  %v517 = vpop.f32.mrb[0].mxu0
  %518 = vmatprep.mubr.bf16.mxu0 0
  %519 = vmatmul.mubr.bf16.gmra.mrb[0].mxu0 %v241
  %v520 = vpop.f32.mrb[0].mxu0
  %v521 = vadd.f32 0.0, %v520
  %v522 = vpop.f32.mrb[0].mxu0
  %v523 = vpop.f32.mrb[0].mxu0
  %v524 = vadd.f32 0.0, %v523
  %v525 = vpop.f32.mrb[0].mxu0
  %526 = vmatprep.mubr.bf16.mxu0 0
  %527 = vmatmul.mubr.bf16.gmra.mrb[0].mxu0 %v242
  %v528 = vpop.f32.mrb[0].mxu0
  %v529 = vadd.f32 0.0, %v528
  %v530 = vpop.f32.mrb[0].mxu0
  %v531 = vpop.f32.mrb[0].mxu0
  %v532 = vadd.f32 0.0, %v531
  %v533 = vpop.f32.mrb[0].mxu0
  %534 = vmatprep.mubr.bf16.mxu0 0
  %535 = vmatmul.mubr.bf16.gmra.mrb[0].mxu0 %v243
  %v536 = vpop.f32.mrb[0].mxu0
  %v537 = vadd.f32 0.0, %v536
  %v538 = vpop.f32.mrb[0].mxu0
  %v539 = vpop.f32.mrb[0].mxu0
  %v540 = vadd.f32 0.0, %v539
  %v541 = vpop.f32.mrb[0].mxu0
  %542 = vmatprep.mubr.bf16.mxu0 0
  %543 = vmatmul.mubr.bf16.gmra.mrb[0].mxu0 %v244
  %v544 = vpop.f32.mrb[0].mxu0
  %v545 = vadd.f32 0.0, %v544
  %v546 = vpop.f32.mrb[0].mxu0
  %v547 = vpop.f32.mrb[0].mxu0
  %v548 = vadd.f32 0.0, %v547
  %v549 = vpop.f32.mrb[0].mxu0
  %550 = vmatprep.mubr.bf16.mxu0 0
  %551 = vmatmul.mubr.bf16.gmra.mrb[0].mxu0 %v245
  %v552 = vpop.f32.mrb[0].mxu0
  %v553 = vadd.f32 0.0, %v552
  %v554 = vpop.f32.mrb[0].mxu0
  %v555 = vpop.f32.mrb[0].mxu0
  %v556 = vadd.f32 0.0, %v555
  %v557 = vpop.f32.mrb[0].mxu0
  %558 = vmatprep.mubr.bf16.mxu0 0
  %559 = vmatmul.mubr.bf16.gmra.mrb[0].mxu0 %v246
  %v560 = vpop.f32.mrb[0].mxu0
  %v561 = vadd.f32 0.0, %v560
  %v562 = vpop.f32.mrb[0].mxu0
  %v563 = vpop.f32.mrb[0].mxu0
  %v564 = vadd.f32 0.0, %v563
  %v565 = vpop.f32.mrb[0].mxu0
  %566 = vmatprep.mubr.bf16.mxu0 0
  %567 = vmatmul.mubr.bf16.gmra.mrb[0].mxu0 %v247
  %v568 = vpop.f32.mrb[0].mxu0
  %v569 = vadd.f32 0.0, %v568
  %v570 = vpop.f32.mrb[0].mxu0
  %v571 = vpop.f32.mrb[0].mxu0
  %v572 = vadd.f32 0.0, %v571
  %v573 = vpop.f32.mrb[0].mxu0
  %574 = vmatprep.mubr.bf16.mxu0 0
  %575 = vmatmul.mubr.bf16.gmra.mrb[0].mxu0 %v248
  %v576 = vpop.f32.mrb[0].mxu0
  %v577 = vadd.f32 0.0, %v576
  %v578 = vpop.f32.mrb[0].mxu0
  %v579 = vpop.f32.mrb[0].mxu0
  %v580 = vadd.f32 0.0, %v579
  %v581 = vpop.f32.mrb[0].mxu0
  %582 = vmatprep.mubr.bf16.mxu0 0
  %583 = vmatmul.mubr.bf16.gmra.mrb[0].mxu0 %v249
  %v584 = vpop.f32.mrb[0].mxu0
  %v585 = vadd.f32 0.0, %v584
  %v586 = vpop.f32.mrb[0].mxu0
  %v587 = vpop.f32.mrb[0].mxu0
  %v588 = vadd.f32 0.0, %v587
  %v589 = vpop.f32.mrb[0].mxu0
  %590 = vmatprep.mubr.bf16.mxu0 0
  %591 = vmatmul.mubr.bf16.gmra.mrb[0].mxu0 %v250
  %v592 = vpop.f32.mrb[0].mxu0
  %v593 = vadd.f32 0.0, %v592
  %v594 = vpop.f32.mrb[0].mxu0
  %v595 = vpop.f32.mrb[0].mxu0
  %v596 = vadd.f32 0.0, %v595
  %v597 = vpop.f32.mrb[0].mxu0
  %598 = vmatprep.mubr.bf16.mxu0 0
  %599 = vmatmul.mubr.bf16.gmra.mrb[0].mxu0 %v251
  %v600 = vpop.f32.mrb[0].mxu0
  %v601 = vadd.f32 0.0, %v600
  %v602 = vpop.f32.mrb[0].mxu0
  %v603 = vpop.f32.mrb[0].mxu0
  %v604 = vadd.f32 0.0, %v603
  %v605 = vpop.f32.mrb[0].mxu0
  %606 = vmatprep.mubr.bf16.mxu0 0
  %607 = vmatmul.mubr.bf16.gmra.mrb[0].mxu0 %v252
  %v608 = vpop.f32.mrb[0].mxu0
  %v609 = vadd.f32 0.0, %v608
  %v610 = vpop.f32.mrb[0].mxu0
  %v611 = vpop.f32.mrb[0].mxu0
  %v612 = vadd.f32 0.0, %v611
  %v613 = vpop.f32.mrb[0].mxu0
  %614 = vmatprep.mubr.bf16.mxu0 0
  %615 = vmatmul.mubr.bf16.gmra.mrb[0].mxu0 %v253
  %v616 = vpop.f32.mrb[0].mxu0
  %v617 = vadd.f32 0.0, %v616
  %v618 = vpop.f32.mrb[0].mxu0
  %v619 = vpop.f32.mrb[0].mxu0
  %v620 = vadd.f32 0.0, %v619
  %v621 = vpop.f32.mrb[0].mxu0
  %622 = vdwg.mxu0
  %v623 = vadd.f32 %v369, %v372
  %v624 = vadd.f32 %v623, %v377
  %v625 = vadd.f32 %v624, %v380
  %v626 = vadd.f32 %v625, %v385
  %v627 = vadd.f32 %v626, %v388
  %v628 = vadd.f32 %v627, %v393
  %v629 = vadd.f32 %v628, %v396
  %v630 = vadd.f32 %v629, %v401
  %v631 = vadd.f32 %v630, %v404
  %v632 = vadd.f32 %v631, %v409
  %v633 = vadd.f32 %v632, %v412
  %v634 = vadd.f32 %v633, %v417
  %v635 = vadd.f32 %v634, %v420
  %v636 = vadd.f32 %v635, %v425
  %v637 = vadd.f32 %v636, %v428
  %v638 = vadd.f32 %v637, %v433
  %v639 = vadd.f32 %v638, %v436
  %v640 = vadd.f32 %v639, %v441
  %v641 = vadd.f32 %v640, %v444
  %v642 = vadd.f32 %v641, %v449
  %v643 = vadd.f32 %v642, %v452
  %v644 = vadd.f32 %v643, %v457
  %v645 = vadd.f32 %v644, %v460
  %v646 = vadd.f32 %v645, %v465
  %v647 = vadd.f32 %v646, %v468
  %v648 = vadd.f32 %v647, %v473
  %v649 = vadd.f32 %v648, %v476
  %v650 = vadd.f32 %v649, %v481
  %v651 = vadd.f32 %v650, %v484
  %v652 = vadd.f32 %v651, %v489
  %v653 = vadd.f32 %v652, %v492
  %v654 = vadd.f32 %v653, %v497
  %v655 = vadd.f32 %v654, %v500
  %v656 = vadd.f32 %v655, %v505
  %v657 = vadd.f32 %v656, %v508
  %v658 = vadd.f32 %v657, %v513
  %v659 = vadd.f32 %v658, %v516
  %v660 = vadd.f32 %v659, %v521
  %v661 = vadd.f32 %v660, %v524
  %v662 = vadd.f32 %v661, %v529
  %v663 = vadd.f32 %v662, %v532
  %v664 = vadd.f32 %v663, %v537
  %v665 = vadd.f32 %v664, %v540
  %v666 = vadd.f32 %v665, %v545
  %v667 = vadd.f32 %v666, %v548
  %v668 = vadd.f32 %v667, %v553
  %v669 = vadd.f32 %v668, %v556
  %v670 = vadd.f32 %v669, %v561
  %v671 = vadd.f32 %v670, %v564
  %v672 = vadd.f32 %v671, %v569
  %v673 = vadd.f32 %v672, %v572
  %v674 = vadd.f32 %v673, %v577
  %v675 = vadd.f32 %v674, %v580
  %v676 = vadd.f32 %v675, %v585
  %v677 = vadd.f32 %v676, %v588
  %v678 = vadd.f32 %v677, %v593
  %v679 = vadd.f32 %v678, %v596
  %v680 = vadd.f32 %v679, %v601
  %v681 = vadd.f32 %v680, %v604
  %v682 = vadd.f32 %v681, %v609
  %v683 = vadd.f32 %v682, %v612
  %v684 = vadd.f32 %v683, %v617
  %v685 = vadd.f32 %v684, %v620
  %v686 = vrot.slane %v685, 4
  %v687 = vadd.f32 %v685, %v686
  %v688 = vrot.slane %v687, 2
  %v689 = vadd.f32 %v687, %v688
  %v690 = vrot.slane %v689, 1
  %v691 = vadd.f32 %v689, %v690
  %v692 = vmul.f32 %v369, %v369
  %v693 = vmul.f32 %v372, %v372
  %v694 = vmul.f32 %v377, %v377
  %v695 = vmul.f32 %v380, %v380
  %v696 = vmul.f32 %v385, %v385
  %v697 = vmul.f32 %v388, %v388
  %v698 = vmul.f32 %v393, %v393
  %v699 = vmul.f32 %v396, %v396
  %v700 = vmul.f32 %v401, %v401
  %v701 = vmul.f32 %v404, %v404
  %v702 = vmul.f32 %v409, %v409
  %v703 = vmul.f32 %v412, %v412
  %v704 = vmul.f32 %v417, %v417
  %v705 = vmul.f32 %v420, %v420
  %v706 = vmul.f32 %v425, %v425
  %v707 = vmul.f32 %v428, %v428
  %v708 = vmul.f32 %v433, %v433
  %v709 = vmul.f32 %v436, %v436
  %v710 = vmul.f32 %v441, %v441
  %v711 = vmul.f32 %v444, %v444
  %v712 = vmul.f32 %v449, %v449
  %v713 = vmul.f32 %v452, %v452
  %v714 = vmul.f32 %v457, %v457
  %v715 = vmul.f32 %v460, %v460
  %v716 = vmul.f32 %v465, %v465
  %v717 = vmul.f32 %v468, %v468
  %v718 = vmul.f32 %v473, %v473
  %v719 = vmul.f32 %v476, %v476
  %v720 = vmul.f32 %v481, %v481
  %v721 = vmul.f32 %v484, %v484
  %v722 = vmul.f32 %v489, %v489
  %v723 = vmul.f32 %v492, %v492
  %v724 = vmul.f32 %v497, %v497
  %v725 = vmul.f32 %v500, %v500
  %v726 = vmul.f32 %v505, %v505
  %v727 = vmul.f32 %v508, %v508
  %v728 = vmul.f32 %v513, %v513
  %v729 = vmul.f32 %v516, %v516
  %v730 = vmul.f32 %v521, %v521
  %v731 = vmul.f32 %v524, %v524
  %v732 = vmul.f32 %v529, %v529
  %v733 = vmul.f32 %v532, %v532
  %v734 = vmul.f32 %v537, %v537
  %v735 = vmul.f32 %v540, %v540
  %v736 = vmul.f32 %v545, %v545
  %v737 = vmul.f32 %v548, %v548
  %v738 = vmul.f32 %v553, %v553
  %v739 = vmul.f32 %v556, %v556
  %v740 = vmul.f32 %v561, %v561
  %v741 = vmul.f32 %v564, %v564
  %v742 = vmul.f32 %v569, %v569
  %v743 = vmul.f32 %v572, %v572
  %v744 = vmul.f32 %v577, %v577
  %v745 = vmul.f32 %v580, %v580
  %v746 = vmul.f32 %v585, %v585
  %v747 = vmul.f32 %v588, %v588
  %v748 = vmul.f32 %v593, %v593
  %v749 = vmul.f32 %v596, %v596
  %v750 = vmul.f32 %v601, %v601
  %v751 = vmul.f32 %v604, %v604
  %v752 = vmul.f32 %v609, %v609
  %v753 = vmul.f32 %v612, %v612
  %v754 = vmul.f32 %v617, %v617
  %v755 = vmul.f32 %v620, %v620
  %v756 = vadd.f32 %v692, %v693
  %v757 = vadd.f32 %v756, %v694
  %v758 = vadd.f32 %v757, %v695
  %v759 = vadd.f32 %v758, %v696
  %v760 = vadd.f32 %v759, %v697
  %v761 = vadd.f32 %v760, %v698
  %v762 = vadd.f32 %v761, %v699
  %v763 = vadd.f32 %v762, %v700
  %v764 = vadd.f32 %v763, %v701
  %v765 = vadd.f32 %v764, %v702
  %v766 = vadd.f32 %v765, %v703
  %v767 = vadd.f32 %v766, %v704
  %v768 = vadd.f32 %v767, %v705
  %v769 = vadd.f32 %v768, %v706
  %v770 = vadd.f32 %v769, %v707
  %v771 = vadd.f32 %v770, %v708
  %v772 = vadd.f32 %v771, %v709
  %v773 = vadd.f32 %v772, %v710
  %v774 = vadd.f32 %v773, %v711
  %v775 = vadd.f32 %v774, %v712
  %v776 = vadd.f32 %v775, %v713
  %v777 = vadd.f32 %v776, %v714
  %v778 = vadd.f32 %v777, %v715
  %v779 = vadd.f32 %v778, %v716
  %v780 = vadd.f32 %v779, %v717
  %v781 = vadd.f32 %v780, %v718
  %v782 = vadd.f32 %v781, %v719
  %v783 = vadd.f32 %v782, %v720
  %v784 = vadd.f32 %v783, %v721
  %v785 = vadd.f32 %v784, %v722
  %v786 = vadd.f32 %v785, %v723
  %v787 = vadd.f32 %v786, %v724
  %v788 = vadd.f32 %v787, %v725
  %v789 = vadd.f32 %v788, %v726
  %v790 = vadd.f32 %v789, %v727
  %v791 = vadd.f32 %v790, %v728
  %v792 = vadd.f32 %v791, %v729
  %v793 = vadd.f32 %v792, %v730
  %v794 = vadd.f32 %v793, %v731
  %v795 = vadd.f32 %v794, %v732
  %v796 = vadd.f32 %v795, %v733
  %v797 = vadd.f32 %v796, %v734
  %v798 = vadd.f32 %v797, %v735
  %v799 = vadd.f32 %v798, %v736
  %v800 = vadd.f32 %v799, %v737
  %v801 = vadd.f32 %v800, %v738
  %v802 = vadd.f32 %v801, %v739
  %v803 = vadd.f32 %v802, %v740
  %v804 = vadd.f32 %v803, %v741
  %v805 = vadd.f32 %v804, %v742
  %v806 = vadd.f32 %v805, %v743
  %v807 = vadd.f32 %v806, %v744
  %v808 = vadd.f32 %v807, %v745
  %v809 = vadd.f32 %v808, %v746
  %v810 = vadd.f32 %v809, %v747
  %v811 = vadd.f32 %v810, %v748
  %v812 = vadd.f32 %v811, %v749
  %v813 = vadd.f32 %v812, %v750
  %v814 = vadd.f32 %v813, %v751
  %v815 = vadd.f32 %v814, %v752
  %v816 = vadd.f32 %v815, %v753
  %v817 = vadd.f32 %v816, %v754
  %v818 = vadd.f32 %v817, %v755
  %v819 = vrot.slane %v818, 4
  %v820 = vadd.f32 %v818, %v819
  %v821 = vrot.slane %v820, 2
  %v822 = vadd.f32 %v820, %v821
  %v823 = vrot.slane %v822, 1
  %v824 = vadd.f32 %v822, %v823
  %v825 = vlaneseq
  %v826 = vshrl.u32 %v825, 7
  %vm827 = vcmp.eq.s32.totalorder %v826, 0
  %v828 = vsel %vm827, %v691, 0.0
  %829 = vst [vmem:[%s2] sm:$0xff] %v828
  %v830 = vsel %vm827, %v824, 0.0
  %831 = vst [vmem:[%s3] sm:$0xff] %v830
  // Predicated region
  $region10: #{conv_bn_relu.2} parent=0 // pred_check
    _
  $region11: #{conv_bn_relu.2} parent=0 // pred_check_branch
    %833 = sbr.rel (0) target = $region13
  $region12: #{conv_bn_relu.2} parent=0 // pred_region
    _
  $region13: #{conv_bn_relu.2} parent=0 // pred_fallthru
    _
  // Predicated region
  $region14: #{conv_bn_relu.2} parent=0 // pred_check
    _
  $region15: #{conv_bn_relu.2} parent=0 // pred_check_branch
    %835 = sbr.rel (0) target = $region17
  $region16: #{conv_bn_relu.2} parent=0 // pred_region
    _
  $region17: #{conv_bn_relu.2} parent=0 // pred_fallthru
    _
  // Predicated region
  $region18: #{conv_bn_relu.2} parent=0 // pred_check
    _
  $region19: #{conv_bn_relu.2} parent=0 // pred_check_branch
    %837 = sbr.rel (0) target = $region21
  $region20: #{conv_bn_relu.2} parent=0 // pred_region
    _
  $region21: #{conv_bn_relu.2} parent=0 // pred_fallthru
    _
  // Predicated region
  $region22: #{conv_bn_relu.2} parent=0 // pred_check
    _
  $region23: #{conv_bn_relu.2} parent=0 // pred_check_branch
    %839 = sbr.rel (0) target = $region25
  $region24: #{conv_bn_relu.2} parent=0 // pred_region
    _
  $region25: #{conv_bn_relu.2} parent=0 // pred_fallthru
    _

// kernel: conv_bn_relu.3
$region0: #{conv_bn_relu.3}
  #allocation0 [shape = 'u32[]', space=smem, size = 0x4, offset = 0x4, fixed_abs, tag = 'smem constant byte address 0x4 - core index']
  #allocation1 [shape = 'u32[144,128]{1,0:T(1,128)}', space=vmem, size = 0x12000, scoped, tag = 'internal scratch']
  %s0 = inlined_call_operand.vmem [shape: bf16[512,128], index: 0, kind: input, shape index: {}]
  %s1 = inlined_call_operand.vmem [shape: bf16[128,128], index: 1, kind: input, shape index: {}]
  %s2 = inlined_call_operand.vmem [shape: f32[1,128], index: 2, kind: input, shape index: {}]
  %s3 = inlined_call_operand.vmem [shape: f32[1,128], index: 3, kind: input, shape index: {}]
  %s4 = inlined_call_operand.vmem [shape: f32[512,128], index: 4, kind: output, shape index: {}]
  %s5 = sld [smem:[#allocation0]]
  $region26: #{conv_bn_relu.3} parent=0
    _
  %s7 = ssub.s32 1, %s5
  %s8 = scalar_select 0, %s7, %s5
  // Predicated region
  $region2: #{conv_bn_relu.3} parent=0 // pred_check
    _
  $region3: #{conv_bn_relu.3} parent=0 // pred_check_branch
    %10 = sbr.rel (0) target = $region5
  $region4: #{conv_bn_relu.3} parent=0 // pred_region
    _
  $region5: #{conv_bn_relu.3} parent=0 // pred_fallthru
    _
  // Predicated region
  $region6: #{conv_bn_relu.3} parent=0 // pred_check
    _
  $region7: #{conv_bn_relu.3} parent=0 // pred_check_branch
    %12 = sbr.rel (0) target = $region9
  $region8: #{conv_bn_relu.3} parent=0 // pred_region
    _
  $region9: #{conv_bn_relu.3} parent=0 // pred_fallthru
    _
  // Predicated region
  $region10: #{conv_bn_relu.3} parent=0 // pred_check
    _
  $region11: #{conv_bn_relu.3} parent=0 // pred_check_branch
    %14 = sbr.rel (0) target = $region13
  $region12: #{conv_bn_relu.3} parent=0 // pred_region
    _
  $region13: #{conv_bn_relu.3} parent=0 // pred_fallthru
    _
  // Predicated region
  $region14: #{conv_bn_relu.3} parent=0 // pred_check
    _
  $region15: #{conv_bn_relu.3} parent=0 // pred_check_branch
    %16 = sbr.rel (0) target = $region17
  $region16: #{conv_bn_relu.3} parent=0 // pred_region
    _
  $region17: #{conv_bn_relu.3} parent=0 // pred_fallthru
    _
  %v18 = vld [vmem:[%s0] sm:$0xf]
  %v19 = vld [vmem:[%s0 + $0x4] sm:$0xf]
  %v20 = vld [vmem:[%s0 + $0x8] sm:$0xf]
  %v21 = vld [vmem:[%s0 + $0xc] sm:$0xf]
  %v22 = vld [vmem:[%s0 + $0x10] sm:$0xf]
  %v23 = vld [vmem:[%s0 + $0x14] sm:$0xf]
  %v24 = vld [vmem:[%s0 + $0x18] sm:$0xf]
  %v25 = vld [vmem:[%s0 + $0x1c] sm:$0xf]
  %v26 = vld [vmem:[%s0 + $0x20] sm:$0xf]
  %v27 = vld [vmem:[%s0 + $0x24] sm:$0xf]
  %v28 = vld [vmem:[%s0 + $0x28] sm:$0xf]
  %v29 = vld [vmem:[%s0 + $0x2c] sm:$0xf]
  %v30 = vld [vmem:[%s0 + $0x30] sm:$0xf]
  %v31 = vld [vmem:[%s0 + $0x34] sm:$0xf]
  %v32 = vld [vmem:[%s0 + $0x38] sm:$0xf]
  %v33 = vld [vmem:[%s0 + $0x3c] sm:$0xf]
  %v34 = vld [vmem:[%s0 + $0x40] sm:$0xf]
  %v35 = vld [vmem:[%s0 + $0x44] sm:$0xf]
  %v36 = vld [vmem:[%s0 + $0x48] sm:$0xf]
  %v37 = vld [vmem:[%s0 + $0x4c] sm:$0xf]
  %v38 = vld [vmem:[%s0 + $0x50] sm:$0xf]
  %v39 = vld [vmem:[%s0 + $0x54] sm:$0xf]
  %v40 = vld [vmem:[%s0 + $0x58] sm:$0xf]
  %v41 = vld [vmem:[%s0 + $0x5c] sm:$0xf]
  %v42 = vld [vmem:[%s0 + $0x60] sm:$0xf]
  %v43 = vld [vmem:[%s0 + $0x64] sm:$0xf]
  %v44 = vld [vmem:[%s0 + $0x68] sm:$0xf]
  %v45 = vld [vmem:[%s0 + $0x6c] sm:$0xf]
  %v46 = vld [vmem:[%s0 + $0x70] sm:$0xf]
  %v47 = vld [vmem:[%s0 + $0x74] sm:$0xf]
  %v48 = vld [vmem:[%s0 + $0x78] sm:$0xf]
  %v49 = vld [vmem:[%s0 + $0x7c] sm:$0xf]
  %v50 = vld [vmem:[%s0 + $0x80] sm:$0xf]
  %v51 = vld [vmem:[%s0 + $0x84] sm:$0xf]
  %v52 = vld [vmem:[%s0 + $0x88] sm:$0xf]
  %v53 = vld [vmem:[%s0 + $0x8c] sm:$0xf]
  %v54 = vld [vmem:[%s0 + $0x90] sm:$0xf]
  %v55 = vld [vmem:[%s0 + $0x94] sm:$0xf]
  %v56 = vld [vmem:[%s0 + $0x98] sm:$0xf]
  %v57 = vld [vmem:[%s0 + $0x9c] sm:$0xf]
  %v58 = vld [vmem:[%s0 + $0xa0] sm:$0xf]
  %v59 = vld [vmem:[%s0 + $0xa4] sm:$0xf]
  %v60 = vld [vmem:[%s0 + $0xa8] sm:$0xf]
  %v61 = vld [vmem:[%s0 + $0xac] sm:$0xf]
  %v62 = vld [vmem:[%s0 + $0xb0] sm:$0xf]
  %v63 = vld [vmem:[%s0 + $0xb4] sm:$0xf]
  %v64 = vld [vmem:[%s0 + $0xb8] sm:$0xf]
  %v65 = vld [vmem:[%s0 + $0xbc] sm:$0xf]
  %v66 = vld [vmem:[%s0 + $0xc0] sm:$0xf]
  %v67 = vld [vmem:[%s0 + $0xc4] sm:$0xf]
  %v68 = vld [vmem:[%s0 + $0xc8] sm:$0xf]
  %v69 = vld [vmem:[%s0 + $0xcc] sm:$0xf]
  %v70 = vld [vmem:[%s0 + $0xd0] sm:$0xf]
  %v71 = vld [vmem:[%s0 + $0xd4] sm:$0xf]
  %v72 = vld [vmem:[%s0 + $0xd8] sm:$0xf]
  %v73 = vld [vmem:[%s0 + $0xdc] sm:$0xf]
  %v74 = vld [vmem:[%s0 + $0xe0] sm:$0xf]
  %v75 = vld [vmem:[%s0 + $0xe4] sm:$0xf]
  %v76 = vld [vmem:[%s0 + $0xe8] sm:$0xf]
  %v77 = vld [vmem:[%s0 + $0xec] sm:$0xf]
  %v78 = vld [vmem:[%s0 + $0xf0] sm:$0xf]
  %v79 = vld [vmem:[%s0 + $0xf4] sm:$0xf]
  %v80 = vld [vmem:[%s0 + $0xf8] sm:$0xf]
  %v81 = vld [vmem:[%s0 + $0xfc] sm:$0xf]
  %v82 = vld [vmem:[%s1] sm:$0xf]
  %v83 = vld [vmem:[%s1 + $0x4] sm:$0xf]
  %v84 = vld [vmem:[%s1 + $0x8] sm:$0xf]
  %v85 = vld [vmem:[%s1 + $0xc] sm:$0xf]
  %v86 = vld [vmem:[%s1 + $0x10] sm:$0xf]
  %v87 = vld [vmem:[%s1 + $0x14] sm:$0xf]
  %v88 = vld [vmem:[%s1 + $0x18] sm:$0xf]
  %v89 = vld [vmem:[%s1 + $0x1c] sm:$0xf]
  %v90 = vld [vmem:[%s1 + $0x20] sm:$0xf]
  %v91 = vld [vmem:[%s1 + $0x24] sm:$0xf]
  %v92 = vld [vmem:[%s1 + $0x28] sm:$0xf]
  %v93 = vld [vmem:[%s1 + $0x2c] sm:$0xf]
  %v94 = vld [vmem:[%s1 + $0x30] sm:$0xf]
  %v95 = vld [vmem:[%s1 + $0x34] sm:$0xf]
  %v96 = vld [vmem:[%s1 + $0x38] sm:$0xf]
  %v97 = vld [vmem:[%s1 + $0x3c] sm:$0xf]
  %v162 = vunpack.c.l.b16 %v18
  %v163 = vunpack.c.l.b16 %v19
  %v164 = vunpack.c.l.b16 %v20
  %v165 = vunpack.c.l.b16 %v21
  %v166 = vunpack.c.l.b16 %v22
  %v167 = vunpack.c.l.b16 %v23
  %v168 = vunpack.c.l.b16 %v24
  %v169 = vunpack.c.l.b16 %v25
  %v170 = vunpack.c.l.b16 %v26
  %v171 = vunpack.c.l.b16 %v27
  %v172 = vunpack.c.l.b16 %v28
  %v173 = vunpack.c.l.b16 %v29
  %v174 = vunpack.c.l.b16 %v30
  %v175 = vunpack.c.l.b16 %v31
  %v176 = vunpack.c.l.b16 %v32
  %v177 = vunpack.c.l.b16 %v33
  %v178 = vunpack.c.l.b16 %v34
  %v179 = vunpack.c.l.b16 %v35
  %v180 = vunpack.c.l.b16 %v36
  %v181 = vunpack.c.l.b16 %v37
  %v182 = vunpack.c.l.b16 %v38
  %v183 = vunpack.c.l.b16 %v39
  %v184 = vunpack.c.l.b16 %v40
  %v185 = vunpack.c.l.b16 %v41
  %v186 = vunpack.c.l.b16 %v42
  %v187 = vunpack.c.l.b16 %v43
  %v188 = vunpack.c.l.b16 %v44
  %v189 = vunpack.c.l.b16 %v45
  %v190 = vunpack.c.l.b16 %v46
  %v191 = vunpack.c.l.b16 %v47
  %v192 = vunpack.c.l.b16 %v48
  %v193 = vunpack.c.l.b16 %v49
  %v194 = vunpack.c.l.b16 %v50
  %v195 = vunpack.c.l.b16 %v51
  %v196 = vunpack.c.l.b16 %v52
  %v197 = vunpack.c.l.b16 %v53
  %v198 = vunpack.c.l.b16 %v54
  %v199 = vunpack.c.l.b16 %v55
  %v200 = vunpack.c.l.b16 %v56
  %v201 = vunpack.c.l.b16 %v57
  %v202 = vunpack.c.l.b16 %v58
  %v203 = vunpack.c.l.b16 %v59
  %v204 = vunpack.c.l.b16 %v60
  %v205 = vunpack.c.l.b16 %v61
  %v206 = vunpack.c.l.b16 %v62
  %v207 = vunpack.c.l.b16 %v63
  %v208 = vunpack.c.l.b16 %v64
  %v209 = vunpack.c.l.b16 %v65
  %v210 = vunpack.c.l.b16 %v66
  %v211 = vunpack.c.l.b16 %v67
  %v212 = vunpack.c.l.b16 %v68
  %v213 = vunpack.c.l.b16 %v69
  %v214 = vunpack.c.l.b16 %v70
  %v215 = vunpack.c.l.b16 %v71
  %v216 = vunpack.c.l.b16 %v72
  %v217 = vunpack.c.l.b16 %v73
  %v218 = vunpack.c.l.b16 %v74
  %v219 = vunpack.c.l.b16 %v75
  %v220 = vunpack.c.l.b16 %v76
  %v221 = vunpack.c.l.b16 %v77
  %v222 = vunpack.c.l.b16 %v78
  %v223 = vunpack.c.l.b16 %v79
  %v224 = vunpack.c.l.b16 %v80
  %v225 = vunpack.c.l.b16 %v81
  %v226 = vpack.c.b16 %v163, %v162
  %v227 = vpack.c.b16 %v165, %v164
  %v228 = vpack.c.b16 %v167, %v166
  %v229 = vpack.c.b16 %v169, %v168
  %v230 = vpack.c.b16 %v171, %v170
  %v231 = vpack.c.b16 %v173, %v172
  %v232 = vpack.c.b16 %v175, %v174
  %v233 = vpack.c.b16 %v177, %v176
  %v234 = vpack.c.b16 %v179, %v178
  %v235 = vpack.c.b16 %v181, %v180
  %v236 = vpack.c.b16 %v183, %v182
  %v237 = vpack.c.b16 %v185, %v184
  %v238 = vpack.c.b16 %v187, %v186
  %v239 = vpack.c.b16 %v189, %v188
  %v240 = vpack.c.b16 %v191, %v190
  %v241 = vpack.c.b16 %v193, %v192
  %v242 = vpack.c.b16 %v195, %v194
  %v243 = vpack.c.b16 %v197, %v196
  %v244 = vpack.c.b16 %v199, %v198
  %v245 = vpack.c.b16 %v201, %v200
  %v246 = vpack.c.b16 %v203, %v202
  %v247 = vpack.c.b16 %v205, %v204
  %v248 = vpack.c.b16 %v207, %v206
  %v249 = vpack.c.b16 %v209, %v208
  %v250 = vpack.c.b16 %v211, %v210
  %v251 = vpack.c.b16 %v213, %v212
  %v252 = vpack.c.b16 %v215, %v214
  %v253 = vpack.c.b16 %v217, %v216
  %v254 = vpack.c.b16 %v219, %v218
  %v255 = vpack.c.b16 %v221, %v220
  %v256 = vpack.c.b16 %v223, %v222
  %v257 = vpack.c.b16 %v225, %v224
  %v306 = vunpack.c.l.b16 %v82
  %v307 = vunpack.c.l.b16 %v83
  %v308 = vunpack.c.l.b16 %v84
  %v309 = vunpack.c.l.b16 %v85
  %v310 = vunpack.c.l.b16 %v86
  %v311 = vunpack.c.l.b16 %v87
  %v312 = vunpack.c.l.b16 %v88
  %v313 = vunpack.c.l.b16 %v89
  %v314 = vunpack.c.l.b16 %v90
  %v315 = vunpack.c.l.b16 %v91
  %v316 = vunpack.c.l.b16 %v92
  %v317 = vunpack.c.l.b16 %v93
  %v318 = vunpack.c.l.b16 %v94
  %v319 = vunpack.c.l.b16 %v95
  %v320 = vunpack.c.l.b16 %v96
  %v321 = vunpack.c.l.b16 %v97
  %v322 = vpack.c.b16 %v307, %v306
  %v323 = vpack.c.b16 %v309, %v308
  %v324 = vpack.c.b16 %v311, %v310
  %v325 = vpack.c.b16 %v313, %v312
  %v326 = vpack.c.b16 %v315, %v314
  %v327 = vpack.c.b16 %v317, %v316
  %v328 = vpack.c.b16 %v319, %v318
  %v329 = vpack.c.b16 %v321, %v320
  %338 = vmatprep.subr.bf16.mxu0 0
  %339 = vmatpush1.bf16.msra.mxu0 %v322
  %340 = vmatprep.subr.bf16.mxu0 0
  %341 = vmatpush1.bf16.msra.mxu0 %v323
  %342 = vmatprep.subr.bf16.mxu0 0
  %343 = vmatpush1.bf16.msra.mxu0 %v324
  %344 = vmatprep.subr.bf16.mxu0 0
  %345 = vmatpush1.bf16.msra.mxu0 %v325
  %346 = vmatprep.subr.bf16.mxu0 0
  %347 = vmatpush1.bf16.msra.mxu0 %v326
  %348 = vmatprep.subr.bf16.mxu0 0
  %349 = vmatpush1.bf16.msra.mxu0 %v327
  %350 = vmatprep.subr.bf16.mxu0 0
  %351 = vmatpush1.bf16.msra.mxu0 %v328
  %352 = vmatprep.subr.bf16.mxu0 0
  %353 = vmatpush1.bf16.msra.mxu0 %v329
  %354 = vmatprep.subr.bf16.mxu0 0
  %355 = vmatpush1.bf16.msra.mxu0 0
  %356 = vmatprep.subr.bf16.mxu0 0
  %357 = vmatpush1.bf16.msra.mxu0 0
  %358 = vmatprep.subr.bf16.mxu0 0
  %359 = vmatpush1.bf16.msra.mxu0 0
  %360 = vmatprep.subr.bf16.mxu0 0
  %361 = vmatpush1.bf16.msra.mxu0 0
  %362 = vmatprep.subr.bf16.mxu0 0
  %363 = vmatpush1.bf16.msra.mxu0 0
  %364 = vmatprep.subr.bf16.mxu0 0
  %365 = vmatpush1.bf16.msra.mxu0 0
  %366 = vmatprep.subr.bf16.mxu0 0
  %367 = vmatpush1.bf16.msra.mxu0 0
  %368 = vmatprep.subr.bf16.mxu0 0
  %369 = vmatpush1.bf16.msra.mxu0 0
  %370 = vmatprep.mubr.bf16.mxu0 0
  %371 = vmatmul.mubr.bf16.gmra.mrb[0].mxu0 %v226
  %v372 = vpop.f32.mrb[0].mxu0
  %v373 = vadd.f32 0.0, %v372
  %v374 = vpop.f32.mrb[0].mxu0
  %v375 = vpop.f32.mrb[0].mxu0
  %v376 = vadd.f32 0.0, %v375
  %v377 = vpop.f32.mrb[0].mxu0
  %378 = vmatprep.mubr.bf16.mxu0 0
  %379 = vmatmul.mubr.bf16.gmra.mrb[0].mxu0 %v227
  %v380 = vpop.f32.mrb[0].mxu0
  %v381 = vadd.f32 0.0, %v380
  %v382 = vpop.f32.mrb[0].mxu0
  %v383 = vpop.f32.mrb[0].mxu0
  %v384 = vadd.f32 0.0, %v383
  %v385 = vpop.f32.mrb[0].mxu0
  %386 = vmatprep.mubr.bf16.mxu0 0
  %387 = vmatmul.mubr.bf16.gmra.mrb[0].mxu0 %v228
  %v388 = vpop.f32.mrb[0].mxu0
  %v389 = vadd.f32 0.0, %v388
  %v390 = vpop.f32.mrb[0].mxu0
  %v391 = vpop.f32.mrb[0].mxu0
  %v392 = vadd.f32 0.0, %v391
  %v393 = vpop.f32.mrb[0].mxu0
  %394 = vmatprep.mubr.bf16.mxu0 0
  %395 = vmatmul.mubr.bf16.gmra.mrb[0].mxu0 %v229
  %v396 = vpop.f32.mrb[0].mxu0
  %v397 = vadd.f32 0.0, %v396
  %v398 = vpop.f32.mrb[0].mxu0
  %v399 = vpop.f32.mrb[0].mxu0
  %v400 = vadd.f32 0.0, %v399
  %v401 = vpop.f32.mrb[0].mxu0
  %402 = vmatprep.mubr.bf16.mxu0 0
  %403 = vmatmul.mubr.bf16.gmra.mrb[0].mxu0 %v230
  %v404 = vpop.f32.mrb[0].mxu0
  %v405 = vadd.f32 0.0, %v404
  %v406 = vpop.f32.mrb[0].mxu0
  %v407 = vpop.f32.mrb[0].mxu0
  %v408 = vadd.f32 0.0, %v407
  %v409 = vpop.f32.mrb[0].mxu0
  %410 = vmatprep.mubr.bf16.mxu0 0
  %411 = vmatmul.mubr.bf16.gmra.mrb[0].mxu0 %v231
  %v412 = vpop.f32.mrb[0].mxu0
  %v413 = vadd.f32 0.0, %v412
  %v414 = vpop.f32.mrb[0].mxu0
  %v415 = vpop.f32.mrb[0].mxu0
  %v416 = vadd.f32 0.0, %v415
  %v417 = vpop.f32.mrb[0].mxu0
  %418 = vmatprep.mubr.bf16.mxu0 0
  %419 = vmatmul.mubr.bf16.gmra.mrb[0].mxu0 %v232
  %v420 = vpop.f32.mrb[0].mxu0
  %v421 = vadd.f32 0.0, %v420
  %v422 = vpop.f32.mrb[0].mxu0
  %v423 = vpop.f32.mrb[0].mxu0
  %v424 = vadd.f32 0.0, %v423
  %v425 = vpop.f32.mrb[0].mxu0
  %426 = vmatprep.mubr.bf16.mxu0 0
  %427 = vmatmul.mubr.bf16.gmra.mrb[0].mxu0 %v233
  %v428 = vpop.f32.mrb[0].mxu0
  %v429 = vadd.f32 0.0, %v428
  %v430 = vpop.f32.mrb[0].mxu0
  %v431 = vpop.f32.mrb[0].mxu0
  %v432 = vadd.f32 0.0, %v431
  %v433 = vpop.f32.mrb[0].mxu0
  %434 = vmatprep.mubr.bf16.mxu0 0
  %435 = vmatmul.mubr.bf16.gmra.mrb[0].mxu0 %v234
  %v436 = vpop.f32.mrb[0].mxu0
  %v437 = vadd.f32 0.0, %v436
  %v438 = vpop.f32.mrb[0].mxu0
  %v439 = vpop.f32.mrb[0].mxu0
  %v440 = vadd.f32 0.0, %v439
  %v441 = vpop.f32.mrb[0].mxu0
  %442 = vmatprep.mubr.bf16.mxu0 0
  %443 = vmatmul.mubr.bf16.gmra.mrb[0].mxu0 %v235
  %v444 = vpop.f32.mrb[0].mxu0
  %v445 = vadd.f32 0.0, %v444
  %v446 = vpop.f32.mrb[0].mxu0
  %v447 = vpop.f32.mrb[0].mxu0
  %v448 = vadd.f32 0.0, %v447
  %v449 = vpop.f32.mrb[0].mxu0
  %450 = vmatprep.mubr.bf16.mxu0 0
  %451 = vmatmul.mubr.bf16.gmra.mrb[0].mxu0 %v236
  %v452 = vpop.f32.mrb[0].mxu0
  %v453 = vadd.f32 0.0, %v452
  %v454 = vpop.f32.mrb[0].mxu0
  %v455 = vpop.f32.mrb[0].mxu0
  %v456 = vadd.f32 0.0, %v455
  %v457 = vpop.f32.mrb[0].mxu0
  %458 = vmatprep.mubr.bf16.mxu0 0
  %459 = vmatmul.mubr.bf16.gmra.mrb[0].mxu0 %v237
  %v460 = vpop.f32.mrb[0].mxu0
  %v461 = vadd.f32 0.0, %v460
  %v462 = vpop.f32.mrb[0].mxu0
  %v463 = vpop.f32.mrb[0].mxu0
  %v464 = vadd.f32 0.0, %v463
  %v465 = vpop.f32.mrb[0].mxu0
  %466 = vmatprep.mubr.bf16.mxu0 0
  %467 = vmatmul.mubr.bf16.gmra.mrb[0].mxu0 %v238
  %v468 = vpop.f32.mrb[0].mxu0
  %v469 = vadd.f32 0.0, %v468
  %v470 = vpop.f32.mrb[0].mxu0
  %v471 = vpop.f32.mrb[0].mxu0
  %v472 = vadd.f32 0.0, %v471
  %v473 = vpop.f32.mrb[0].mxu0
  %474 = vmatprep.mubr.bf16.mxu0 0
  %475 = vmatmul.mubr.bf16.gmra.mrb[0].mxu0 %v239
  %v476 = vpop.f32.mrb[0].mxu0
  %v477 = vadd.f32 0.0, %v476
  %v478 = vpop.f32.mrb[0].mxu0
  %v479 = vpop.f32.mrb[0].mxu0
  %v480 = vadd.f32 0.0, %v479
  %v481 = vpop.f32.mrb[0].mxu0
  %482 = vmatprep.mubr.bf16.mxu0 0
  %483 = vmatmul.mubr.bf16.gmra.mrb[0].mxu0 %v240
  %v484 = vpop.f32.mrb[0].mxu0
  %v485 = vadd.f32 0.0, %v484
  %v486 = vpop.f32.mrb[0].mxu0
  %v487 = vpop.f32.mrb[0].mxu0
  %v488 = vadd.f32 0.0, %v487
  %v489 = vpop.f32.mrb[0].mxu0
  %490 = vmatprep.mubr.bf16.mxu0 0
  %491 = vmatmul.mubr.bf16.gmra.mrb[0].mxu0 %v241
  %v492 = vpop.f32.mrb[0].mxu0
  %v493 = vadd.f32 0.0, %v492
  %v494 = vpop.f32.mrb[0].mxu0
  %v495 = vpop.f32.mrb[0].mxu0
  %v496 = vadd.f32 0.0, %v495
  %v497 = vpop.f32.mrb[0].mxu0
  %498 = vmatprep.mubr.bf16.mxu0 0
  %499 = vmatmul.mubr.bf16.gmra.mrb[0].mxu0 %v242
  %v500 = vpop.f32.mrb[0].mxu0
  %v501 = vadd.f32 0.0, %v500
  %v502 = vpop.f32.mrb[0].mxu0
  %v503 = vpop.f32.mrb[0].mxu0
  %v504 = vadd.f32 0.0, %v503
  %v505 = vpop.f32.mrb[0].mxu0
  %506 = vmatprep.mubr.bf16.mxu0 0
  %507 = vmatmul.mubr.bf16.gmra.mrb[0].mxu0 %v243
  %v508 = vpop.f32.mrb[0].mxu0
  %v509 = vadd.f32 0.0, %v508
  %v510 = vpop.f32.mrb[0].mxu0
  %v511 = vpop.f32.mrb[0].mxu0
  %v512 = vadd.f32 0.0, %v511
  %v513 = vpop.f32.mrb[0].mxu0
  %514 = vmatprep.mubr.bf16.mxu0 0
  %515 = vmatmul.mubr.bf16.gmra.mrb[0].mxu0 %v244
  %v516 = vpop.f32.mrb[0].mxu0
  %v517 = vadd.f32 0.0, %v516
  %v518 = vpop.f32.mrb[0].mxu0
  %v519 = vpop.f32.mrb[0].mxu0
  %v520 = vadd.f32 0.0, %v519
  %v521 = vpop.f32.mrb[0].mxu0
  %522 = vmatprep.mubr.bf16.mxu0 0
  %523 = vmatmul.mubr.bf16.gmra.mrb[0].mxu0 %v245
  %v524 = vpop.f32.mrb[0].mxu0
  %v525 = vadd.f32 0.0, %v524
  %v526 = vpop.f32.mrb[0].mxu0
  %v527 = vpop.f32.mrb[0].mxu0
  %v528 = vadd.f32 0.0, %v527
  %v529 = vpop.f32.mrb[0].mxu0
  %530 = vmatprep.mubr.bf16.mxu0 0
  %531 = vmatmul.mubr.bf16.gmra.mrb[0].mxu0 %v246
  %v532 = vpop.f32.mrb[0].mxu0
  %v533 = vadd.f32 0.0, %v532
  %v534 = vpop.f32.mrb[0].mxu0
  %v535 = vpop.f32.mrb[0].mxu0
  %v536 = vadd.f32 0.0, %v535
  %v537 = vpop.f32.mrb[0].mxu0
  %538 = vmatprep.mubr.bf16.mxu0 0
  %539 = vmatmul.mubr.bf16.gmra.mrb[0].mxu0 %v247
  %v540 = vpop.f32.mrb[0].mxu0
  %v541 = vadd.f32 0.0, %v540
  %v542 = vpop.f32.mrb[0].mxu0
  %v543 = vpop.f32.mrb[0].mxu0
  %v544 = vadd.f32 0.0, %v543
  %v545 = vpop.f32.mrb[0].mxu0
  %546 = vmatprep.mubr.bf16.mxu0 0
  %547 = vmatmul.mubr.bf16.gmra.mrb[0].mxu0 %v248
  %v548 = vpop.f32.mrb[0].mxu0
  %v549 = vadd.f32 0.0, %v548
  %v550 = vpop.f32.mrb[0].mxu0
  %v551 = vpop.f32.mrb[0].mxu0
  %v552 = vadd.f32 0.0, %v551
  %v553 = vpop.f32.mrb[0].mxu0
  %554 = vmatprep.mubr.bf16.mxu0 0
  %555 = vmatmul.mubr.bf16.gmra.mrb[0].mxu0 %v249
  %v556 = vpop.f32.mrb[0].mxu0
  %v557 = vadd.f32 0.0, %v556
  %v558 = vpop.f32.mrb[0].mxu0
  %v559 = vpop.f32.mrb[0].mxu0
  %v560 = vadd.f32 0.0, %v559
  %v561 = vpop.f32.mrb[0].mxu0
  %562 = vmatprep.mubr.bf16.mxu0 0
  %563 = vmatmul.mubr.bf16.gmra.mrb[0].mxu0 %v250
  %v564 = vpop.f32.mrb[0].mxu0
  %v565 = vadd.f32 0.0, %v564
  %v566 = vpop.f32.mrb[0].mxu0
  %v567 = vpop.f32.mrb[0].mxu0
  %v568 = vadd.f32 0.0, %v567
  %v569 = vpop.f32.mrb[0].mxu0
  %570 = vmatprep.mubr.bf16.mxu0 0
  %571 = vmatmul.mubr.bf16.gmra.mrb[0].mxu0 %v251
  %v572 = vpop.f32.mrb[0].mxu0
  %v573 = vadd.f32 0.0, %v572
  %v574 = vpop.f32.mrb[0].mxu0
  %v575 = vpop.f32.mrb[0].mxu0
  %v576 = vadd.f32 0.0, %v575
  %v577 = vpop.f32.mrb[0].mxu0
  %578 = vmatprep.mubr.bf16.mxu0 0
  %579 = vmatmul.mubr.bf16.gmra.mrb[0].mxu0 %v252
  %v580 = vpop.f32.mrb[0].mxu0
  %v581 = vadd.f32 0.0, %v580
  %v582 = vpop.f32.mrb[0].mxu0
  %v583 = vpop.f32.mrb[0].mxu0
  %v584 = vadd.f32 0.0, %v583
  %v585 = vpop.f32.mrb[0].mxu0
  %586 = vmatprep.mubr.bf16.mxu0 0
  %587 = vmatmul.mubr.bf16.gmra.mrb[0].mxu0 %v253
  %v588 = vpop.f32.mrb[0].mxu0
  %v589 = vadd.f32 0.0, %v588
  %v590 = vpop.f32.mrb[0].mxu0
  %v591 = vpop.f32.mrb[0].mxu0
  %v592 = vadd.f32 0.0, %v591
  %v593 = vpop.f32.mrb[0].mxu0
  %594 = vmatprep.mubr.bf16.mxu0 0
  %595 = vmatmul.mubr.bf16.gmra.mrb[0].mxu0 %v254
  %v596 = vpop.f32.mrb[0].mxu0
  %v597 = vadd.f32 0.0, %v596
  %v598 = vpop.f32.mrb[0].mxu0
  %v599 = vpop.f32.mrb[0].mxu0
  %v600 = vadd.f32 0.0, %v599
  %v601 = vpop.f32.mrb[0].mxu0
  %602 = vmatprep.mubr.bf16.mxu0 0
  %603 = vmatmul.mubr.bf16.gmra.mrb[0].mxu0 %v255
  %v604 = vpop.f32.mrb[0].mxu0
  %v605 = vadd.f32 0.0, %v604
  %v606 = vpop.f32.mrb[0].mxu0
  %v607 = vpop.f32.mrb[0].mxu0
  %v608 = vadd.f32 0.0, %v607
  %v609 = vpop.f32.mrb[0].mxu0
  %610 = vmatprep.mubr.bf16.mxu0 0
  %611 = vmatmul.mubr.bf16.gmra.mrb[0].mxu0 %v256
  %v612 = vpop.f32.mrb[0].mxu0
  %v613 = vadd.f32 0.0, %v612
  %v614 = vpop.f32.mrb[0].mxu0
  %v615 = vpop.f32.mrb[0].mxu0
  %v616 = vadd.f32 0.0, %v615
  %v617 = vpop.f32.mrb[0].mxu0
  %618 = vmatprep.mubr.bf16.mxu0 0
  %619 = vmatmul.mubr.bf16.gmra.mrb[0].mxu0 %v257
  %v620 = vpop.f32.mrb[0].mxu0
  %v621 = vadd.f32 0.0, %v620
  %v622 = vpop.f32.mrb[0].mxu0
  %v623 = vpop.f32.mrb[0].mxu0
  %v624 = vadd.f32 0.0, %v623
  %v625 = vpop.f32.mrb[0].mxu0
  %626 = vdwg.mxu0
  %v627 = vld [vmem:[%s2] sm:$0x1]
  %v629 = vlaneseq
  %v630 = vshrl.u32 %v629, 7
  %v631 = vsub.s32 0, %v630
  %v632 = vrot.slane %v627, %v631
  %v634 = vmul.f32 %v373, %v632
  %v635 = vmul.f32 %v376, %v632
  %v636 = vmul.f32 %v381, %v632
  %v637 = vmul.f32 %v384, %v632
  %v638 = vmul.f32 %v389, %v632
  %v639 = vmul.f32 %v392, %v632
  %v640 = vmul.f32 %v397, %v632
  %v641 = vmul.f32 %v400, %v632
  %v642 = vmul.f32 %v405, %v632
  %v643 = vmul.f32 %v408, %v632
  %v644 = vmul.f32 %v413, %v632
  %v645 = vmul.f32 %v416, %v632
  %v646 = vmul.f32 %v421, %v632
  %v647 = vmul.f32 %v424, %v632
  %v648 = vmul.f32 %v429, %v632
  %v649 = vmul.f32 %v432, %v632
  %v650 = vmul.f32 %v437, %v632
  %v651 = vmul.f32 %v440, %v632
  %v652 = vmul.f32 %v445, %v632
  %v653 = vmul.f32 %v448, %v632
  %v654 = vmul.f32 %v453, %v632
  %v655 = vmul.f32 %v456, %v632
  %v656 = vmul.f32 %v461, %v632
  %v657 = vmul.f32 %v464, %v632
  %v658 = vmul.f32 %v469, %v632
  %v659 = vmul.f32 %v472, %v632
  %v660 = vmul.f32 %v477, %v632
  %v661 = vmul.f32 %v480, %v632
  %v662 = vmul.f32 %v485, %v632
  %v663 = vmul.f32 %v488, %v632
  %v664 = vmul.f32 %v493, %v632
  %v665 = vmul.f32 %v496, %v632
  %v666 = vmul.f32 %v501, %v632
  %v667 = vmul.f32 %v504, %v632
  %v668 = vmul.f32 %v509, %v632
  %v669 = vmul.f32 %v512, %v632
  %v670 = vmul.f32 %v517, %v632
  %v671 = vmul.f32 %v520, %v632
  %v672 = vmul.f32 %v525, %v632
  %v673 = vmul.f32 %v528, %v632
  %v674 = vmul.f32 %v533, %v632
  %v675 = vmul.f32 %v536, %v632
  %v676 = vmul.f32 %v541, %v632
  %v677 = vmul.f32 %v544, %v632
  %v678 = vmul.f32 %v549, %v632
  %v679 = vmul.f32 %v552, %v632
  %v680 = vmul.f32 %v557, %v632
  %v681 = vmul.f32 %v560, %v632
  %v682 = vmul.f32 %v565, %v632
  %v683 = vmul.f32 %v568, %v632
  %v684 = vmul.f32 %v573, %v632
  %v685 = vmul.f32 %v576, %v632
  %v686 = vmul.f32 %v581, %v632
  %v687 = vmul.f32 %v584, %v632
  %v688 = vmul.f32 %v589, %v632
  %v689 = vmul.f32 %v592, %v632
  %v690 = vmul.f32 %v597, %v632
  %v691 = vmul.f32 %v600, %v632
  %v692 = vmul.f32 %v605, %v632
  %v693 = vmul.f32 %v608, %v632
  %v694 = vmul.f32 %v613, %v632
  %v695 = vmul.f32 %v616, %v632
  %v696 = vmul.f32 %v621, %v632
  %v697 = vmul.f32 %v624, %v632
  %v698 = vld [vmem:[%s3] sm:$0x1]
  %v700 = vlaneseq
  %v701 = vshrl.u32 %v700, 7
  %v702 = vsub.s32 0, %v701
  %v703 = vrot.slane %v698, %v702
  %v705 = vadd.f32 %v634, %v703
  %v706 = vadd.f32 %v635, %v703
  %v707 = vadd.f32 %v636, %v703
  %v708 = vadd.f32 %v637, %v703
  %v709 = vadd.f32 %v638, %v703
  %v710 = vadd.f32 %v639, %v703
  %v711 = vadd.f32 %v640, %v703
  %v712 = vadd.f32 %v641, %v703
  %v713 = vadd.f32 %v642, %v703
  %v714 = vadd.f32 %v643, %v703
  %v715 = vadd.f32 %v644, %v703
  %v716 = vadd.f32 %v645, %v703
  %v717 = vadd.f32 %v646, %v703
  %v718 = vadd.f32 %v647, %v703
  %v719 = vadd.f32 %v648, %v703
  %v720 = vadd.f32 %v649, %v703
  %v721 = vadd.f32 %v650, %v703
  %v722 = vadd.f32 %v651, %v703
  %v723 = vadd.f32 %v652, %v703
  %v724 = vadd.f32 %v653, %v703
  %v725 = vadd.f32 %v654, %v703
  %v726 = vadd.f32 %v655, %v703
  %v727 = vadd.f32 %v656, %v703
  %v728 = vadd.f32 %v657, %v703
  %v729 = vadd.f32 %v658, %v703
  %v730 = vadd.f32 %v659, %v703
  %v731 = vadd.f32 %v660, %v703
  %v732 = vadd.f32 %v661, %v703
  %v733 = vadd.f32 %v662, %v703
  %v734 = vadd.f32 %v663, %v703
  %v735 = vadd.f32 %v664, %v703
  %v736 = vadd.f32 %v665, %v703
  %v737 = vadd.f32 %v666, %v703
  %v738 = vadd.f32 %v667, %v703
  %v739 = vadd.f32 %v668, %v703
  %v740 = vadd.f32 %v669, %v703
  %v741 = vadd.f32 %v670, %v703
  %v742 = vadd.f32 %v671, %v703
  %v743 = vadd.f32 %v672, %v703
  %v744 = vadd.f32 %v673, %v703
  %v745 = vadd.f32 %v674, %v703
  %v746 = vadd.f32 %v675, %v703
  %v747 = vadd.f32 %v676, %v703
  %v748 = vadd.f32 %v677, %v703
  %v749 = vadd.f32 %v678, %v703
  %v750 = vadd.f32 %v679, %v703
  %v751 = vadd.f32 %v680, %v703
  %v752 = vadd.f32 %v681, %v703
  %v753 = vadd.f32 %v682, %v703
  %v754 = vadd.f32 %v683, %v703
  %v755 = vadd.f32 %v684, %v703
  %v756 = vadd.f32 %v685, %v703
  %v757 = vadd.f32 %v686, %v703
  %v758 = vadd.f32 %v687, %v703
  %v759 = vadd.f32 %v688, %v703
  %v760 = vadd.f32 %v689, %v703
  %v761 = vadd.f32 %v690, %v703
  %v762 = vadd.f32 %v691, %v703
  %v763 = vadd.f32 %v692, %v703
  %v764 = vadd.f32 %v693, %v703
  %v765 = vadd.f32 %v694, %v703
  %v766 = vadd.f32 %v695, %v703
  %v767 = vadd.f32 %v696, %v703
  %v768 = vadd.f32 %v697, %v703
  %v769 = vmax.f32 %v705, 0.0
  %v770 = vmax.f32 %v706, 0.0
  %v771 = vmax.f32 %v707, 0.0
  %v772 = vmax.f32 %v708, 0.0
  %v773 = vmax.f32 %v709, 0.0
  %v774 = vmax.f32 %v710, 0.0
  %v775 = vmax.f32 %v711, 0.0
  %v776 = vmax.f32 %v712, 0.0
  %v777 = vmax.f32 %v713, 0.0
  %v778 = vmax.f32 %v714, 0.0
  %v779 = vmax.f32 %v715, 0.0
  %v780 = vmax.f32 %v716, 0.0
  %v781 = vmax.f32 %v717, 0.0
  %v782 = vmax.f32 %v718, 0.0
  %v783 = vmax.f32 %v719, 0.0
  %v784 = vmax.f32 %v720, 0.0
  %v785 = vmax.f32 %v721, 0.0
  %v786 = vmax.f32 %v722, 0.0
  %v787 = vmax.f32 %v723, 0.0
  %v788 = vmax.f32 %v724, 0.0
  %v789 = vmax.f32 %v725, 0.0
  %v790 = vmax.f32 %v726, 0.0
  %v791 = vmax.f32 %v727, 0.0
  %v792 = vmax.f32 %v728, 0.0
  %v793 = vmax.f32 %v729, 0.0
  %v794 = vmax.f32 %v730, 0.0
  %v795 = vmax.f32 %v731, 0.0
  %v796 = vmax.f32 %v732, 0.0
  %v797 = vmax.f32 %v733, 0.0
  %v798 = vmax.f32 %v734, 0.0
  %v799 = vmax.f32 %v735, 0.0
  %v800 = vmax.f32 %v736, 0.0
  %v801 = vmax.f32 %v737, 0.0
  %v802 = vmax.f32 %v738, 0.0
  %v803 = vmax.f32 %v739, 0.0
  %v804 = vmax.f32 %v740, 0.0
  %v805 = vmax.f32 %v741, 0.0
  %v806 = vmax.f32 %v742, 0.0
  %v807 = vmax.f32 %v743, 0.0
  %v808 = vmax.f32 %v744, 0.0
  %v809 = vmax.f32 %v745, 0.0
  %v810 = vmax.f32 %v746, 0.0
  %v811 = vmax.f32 %v747, 0.0
  %v812 = vmax.f32 %v748, 0.0
  %v813 = vmax.f32 %v749, 0.0
  %v814 = vmax.f32 %v750, 0.0
  %v815 = vmax.f32 %v751, 0.0
  %v816 = vmax.f32 %v752, 0.0
  %v817 = vmax.f32 %v753, 0.0
  %v818 = vmax.f32 %v754, 0.0
  %v819 = vmax.f32 %v755, 0.0
  %v820 = vmax.f32 %v756, 0.0
  %v821 = vmax.f32 %v757, 0.0
  %v822 = vmax.f32 %v758, 0.0
  %v823 = vmax.f32 %v759, 0.0
  %v824 = vmax.f32 %v760, 0.0
  %v825 = vmax.f32 %v761, 0.0
  %v826 = vmax.f32 %v762, 0.0
  %v827 = vmax.f32 %v763, 0.0
  %v828 = vmax.f32 %v764, 0.0
  %v829 = vmax.f32 %v765, 0.0
  %v830 = vmax.f32 %v766, 0.0
  %v831 = vmax.f32 %v767, 0.0
  %v832 = vmax.f32 %v768, 0.0
  %833 = vst [vmem:[%s4] sm:$0xff] %v769
  %834 = vst [vmem:[%s4 + $0x8] sm:$0xff] %v770
  %835 = vst [vmem:[%s4 + $0x10] sm:$0xff] %v771
  %836 = vst [vmem:[%s4 + $0x18] sm:$0xff] %v772
  %837 = vst [vmem:[%s4 + $0x20] sm:$0xff] %v773
  %838 = vst [vmem:[%s4 + $0x28] sm:$0xff] %v774
  %839 = vst [vmem:[%s4 + $0x30] sm:$0xff] %v775
  %840 = vst [vmem:[%s4 + $0x38] sm:$0xff] %v776
  %841 = vst [vmem:[%s4 + $0x40] sm:$0xff] %v777
  %842 = vst [vmem:[%s4 + $0x48] sm:$0xff] %v778
  %843 = vst [vmem:[%s4 + $0x50] sm:$0xff] %v779
  %844 = vst [vmem:[%s4 + $0x58] sm:$0xff] %v780
  %845 = vst [vmem:[%s4 + $0x60] sm:$0xff] %v781
  %846 = vst [vmem:[%s4 + $0x68] sm:$0xff] %v782
  %847 = vst [vmem:[%s4 + $0x70] sm:$0xff] %v783
  %848 = vst [vmem:[%s4 + $0x78] sm:$0xff] %v784
  %849 = vst [vmem:[%s4 + $0x80] sm:$0xff] %v785
  %850 = vst [vmem:[%s4 + $0x88] sm:$0xff] %v786
  %851 = vst [vmem:[%s4 + $0x90] sm:$0xff] %v787
  %852 = vst [vmem:[%s4 + $0x98] sm:$0xff] %v788
  %853 = vst [vmem:[%s4 + $0xa0] sm:$0xff] %v789
  %854 = vst [vmem:[%s4 + $0xa8] sm:$0xff] %v790
  %855 = vst [vmem:[%s4 + $0xb0] sm:$0xff] %v791
  %856 = vst [vmem:[%s4 + $0xb8] sm:$0xff] %v792
  %857 = vst [vmem:[%s4 + $0xc0] sm:$0xff] %v793
  %858 = vst [vmem:[%s4 + $0xc8] sm:$0xff] %v794
  %859 = vst [vmem:[%s4 + $0xd0] sm:$0xff] %v795
  %860 = vst [vmem:[%s4 + $0xd8] sm:$0xff] %v796
  %861 = vst [vmem:[%s4 + $0xe0] sm:$0xff] %v797
  %862 = vst [vmem:[%s4 + $0xe8] sm:$0xff] %v798
  %863 = vst [vmem:[%s4 + $0xf0] sm:$0xff] %v799
  %864 = vst [vmem:[%s4 + $0xf8] sm:$0xff] %v800
  %865 = vst [vmem:[%s4 + $0x100] sm:$0xff] %v801
  %866 = vst [vmem:[%s4 + $0x108] sm:$0xff] %v802
  %867 = vst [vmem:[%s4 + $0x110] sm:$0xff] %v803
  %868 = vst [vmem:[%s4 + $0x118] sm:$0xff] %v804
  %869 = vst [vmem:[%s4 + $0x120] sm:$0xff] %v805
  %870 = vst [vmem:[%s4 + $0x128] sm:$0xff] %v806
  %871 = vst [vmem:[%s4 + $0x130] sm:$0xff] %v807
  %872 = vst [vmem:[%s4 + $0x138] sm:$0xff] %v808
  %873 = vst [vmem:[%s4 + $0x140] sm:$0xff] %v809
  %874 = vst [vmem:[%s4 + $0x148] sm:$0xff] %v810
  %875 = vst [vmem:[%s4 + $0x150] sm:$0xff] %v811
  %876 = vst [vmem:[%s4 + $0x158] sm:$0xff] %v812
  %877 = vst [vmem:[%s4 + $0x160] sm:$0xff] %v813
  %878 = vst [vmem:[%s4 + $0x168] sm:$0xff] %v814
  %879 = vst [vmem:[%s4 + $0x170] sm:$0xff] %v815
  %880 = vst [vmem:[%s4 + $0x178] sm:$0xff] %v816
  %881 = vst [vmem:[%s4 + $0x180] sm:$0xff] %v817
  %882 = vst [vmem:[%s4 + $0x188] sm:$0xff] %v818
  %883 = vst [vmem:[%s4 + $0x190] sm:$0xff] %v819
  %884 = vst [vmem:[%s4 + $0x198] sm:$0xff] %v820
  %885 = vst [vmem:[%s4 + $0x1a0] sm:$0xff] %v821
  %886 = vst [vmem:[%s4 + $0x1a8] sm:$0xff] %v822
  %887 = vst [vmem:[%s4 + $0x1b0] sm:$0xff] %v823
  %888 = vst [vmem:[%s4 + $0x1b8] sm:$0xff] %v824
  %889 = vst [vmem:[%s4 + $0x1c0] sm:$0xff] %v825
  %890 = vst [vmem:[%s4 + $0x1c8] sm:$0xff] %v826
  %891 = vst [vmem:[%s4 + $0x1d0] sm:$0xff] %v827
  %892 = vst [vmem:[%s4 + $0x1d8] sm:$0xff] %v828
  %893 = vst [vmem:[%s4 + $0x1e0] sm:$0xff] %v829
  %894 = vst [vmem:[%s4 + $0x1e8] sm:$0xff] %v830
  %895 = vst [vmem:[%s4 + $0x1f0] sm:$0xff] %v831
  %896 = vst [vmem:[%s4 + $0x1f8] sm:$0xff] %v832
  // Predicated region
  $region18: #{conv_bn_relu.3} parent=0 // pred_check
    _
  $region19: #{conv_bn_relu.3} parent=0 // pred_check_branch
    %898 = sbr.rel (0) target = $region21
  $region20: #{conv_bn_relu.3} parent=0 // pred_region
    _
  $region21: #{conv_bn_relu.3} parent=0 // pred_fallthru
    _
  // Predicated region
  $region22: #{conv_bn_relu.3} parent=0 // pred_check
    _
  $region23: #{conv_bn_relu.3} parent=0 // pred_check_branch
    %900 = sbr.rel (0) target = $region25
  $region24: #{conv_bn_relu.3} parent=0 // pred_region
    _
  $region25: #{conv_bn_relu.3} parent=0 // pred_fallthru
    _

</llo_original>
